<compile_context>
chip_gen: v5e
topology: v5e:2x2
jax: 0.10.0
libtpu: 0.0.40
codegen_flags: <defaults>
</compile_context>

<pallas_src>
import jax
import jax.numpy as jnp
from jax.experimental import pallas as pl
from jax.experimental.pallas import tpu as pltpu


# ---------------------------------------------------------------------------
# Stage 1: conv1/conv2 (+bias+ReLU), conv3 matmul (bias/ReLU commuted out),
# global max-pool over points.  Channel-first: every matmul is
# (C_out, C_in) @ (C_in, tile_n).  Grid = (B, n_split, N_steps); the last axis
# is the reduction ("arbitrary") and the pooled output block is resident across
# it as a running max.
# ---------------------------------------------------------------------------
def conv_pool_kernel(x_ref,
                     w1_ref, b1_ref,
                     w2_ref, b2_ref,
                     w3_ref,
                     g_ref):
    n_idx = pl.program_id(2)

    x = x_ref[0].astype(jnp.bfloat16)                                 # (k, tn) bf16

    h = jnp.dot(w1_ref[...], x, preferred_element_type=jnp.float32) + b1_ref[...]
    h = jnp.maximum(h, 0.0).astype(jnp.bfloat16)                      # (64, tn)
    h = jnp.dot(w2_ref[...], h, preferred_element_type=jnp.float32) + b2_ref[...]
    h = jnp.maximum(h, 0.0).astype(jnp.bfloat16)                      # (128, tn)
    # conv3: bias + ReLU are commuted past the max-pool into the fc head
    # (exact: max is monotone, b3 is per-channel constant over points).
    h = jnp.dot(w3_ref[...], h, preferred_element_type=jnp.float32)   # (1024, tn) f32

    blk = jnp.max(h, axis=-1, keepdims=True)                          # (1024, 1) f32
    blk = blk.reshape(1, 1, 1024, 1)

    # Running max across N steps (output block is resident across the last axis).
    @pl.when(n_idx == 0)
    def _():
        g_ref[...] = blk

    @pl.when(n_idx > 0)
    def _():
        g_ref[...] = jnp.maximum(g_ref[...], blk)


# ---------------------------------------------------------------------------
# Stage 2: combine n_split partial maxima, apply the commuted conv3 bias+ReLU,
# then fc1/fc2/fc3, run once over the whole batch (M = B).
# ---------------------------------------------------------------------------
def fc_head_kernel(g_ref, b3_ref,
                   wf1_ref, bf1_ref,
                   wf2_ref, bf2_ref,
                   wf3_ref, bf3_ref,
                   iden_ref,
                   out_ref):
    # Combine the (static, <=2) partial maxima from the parallel N-split.
    g = g_ref[0]                                                      # (B, 1024) f32
    for s in range(1, g_ref.shape[0]):
        g = jnp.maximum(g, g_ref[s])

    # Commuted conv3 bias + ReLU.
    g = jnp.maximum(g + b3_ref[...], 0.0).astype(jnp.bfloat16)        # (B, 1024)

    f = jnp.dot(g, wf1_ref[...], preferred_element_type=jnp.float32) + bf1_ref[...]
    f = jnp.maximum(f, 0.0).astype(jnp.bfloat16)                      # (B, 512)
    f = jnp.dot(f, wf2_ref[...], preferred_element_type=jnp.float32) + bf2_ref[...]
    f = jnp.maximum(f, 0.0).astype(jnp.bfloat16)                      # (B, 256)
    f = jnp.dot(f, wf3_ref[...], preferred_element_type=jnp.float32) + bf3_ref[...]
    out_ref[...] = f + iden_ref[...]                                  # (B, k*k) f32


# ---------------------------------------------------------------------------
# Wrapper
# ---------------------------------------------------------------------------
def stnkd_forward(x_bkn, params, k, *, tile_n=None, n_split=None):
    """x_bkn: (B, k, N) float32 (PyTorch Conv1d NCL layout). Returns (B, k, k) f32."""
    B, k_in, N = x_bkn.shape
    assert k_in == k
    (w1, b1, w2, b2, w3, b3, wf1, bf1, wf2, bf2, wf3, bf3) = params

    # --- tiling choices -----------------------------------------------------
    if tile_n is None:
        if N <= 2048:
            tile_n = N                       # whole point axis in one tile
        else:
            tile_n = 0
            for cand in (2048, 1536, 1024, 768, 512, 384, 256, 128):
                if N % cand == 0:
                    tile_n = cand
                    break
            assert tile_n, f"N={N}: pad the point axis to a multiple of 128 upstream"
    assert tile_n == N or tile_n % 128 == 0, tile_n
    assert N % tile_n == 0, (N, tile_n)
    n_tiles = N // tile_n

    if n_split is None:
        # v7x has 2 TensorCores/chip: with a single batch element, split the
        # point axis over a second parallel grid axis so both cores are busy.
        n_split = 2 if (B == 1 and n_tiles >= 2 and n_tiles % 2 == 0) else 1
    assert n_tiles % n_split == 0, (n_tiles, n_split)
    n_steps = n_tiles // n_split

    conv_consts = (w1, b1, w2, b2, w3)       # b3 is applied post-pool in the fc head

    def _const_spec(arr):
        nd = arr.ndim
        return pl.BlockSpec(arr.shape, lambda b, p, n, _nd=nd: (0,) * _nd)

    # --- stage 1: conv stack (channel-first) + max-pool ----------------------
    g4 = pl.pallas_call(
        conv_pool_kernel,
        out_shape=jax.ShapeDtypeStruct((n_split, B, 1024, 1), jnp.float32),
        grid_spec=pltpu.PrefetchScalarGridSpec(
            num_scalar_prefetch=0,
            grid=(B, n_split, n_steps),
            in_specs=[pl.BlockSpec((1, k, tile_n),
                                   lambda b, p, n, _s=n_steps: (b, 0, p * _s + n))]
                     + [_const_spec(a) for a in conv_consts],
            out_specs=pl.BlockSpec((1, 1, 1024, 1), lambda b, p, n: (p, b, 0, 0)),
        ),
        compiler_params=pltpu.CompilerParams(
            dimension_semantics=("parallel", "parallel", "arbitrary"),
            vmem_limit_bytes=48 * 1024 * 1024),
    )(x_bkn, *conv_consts)

    g = g4.reshape(n_split, B, 1024)         # contiguous squeeze (free)

    # --- stage 2: fc head once at M = B --------------------------------------
    iden = jnp.eye(k, dtype=jnp.float32).reshape(1, k * k)
    fc_args = (g, b3, wf1, bf1, wf2, bf2, wf3, bf3, iden)

    def _full_spec1(arr):
        nd = arr.ndim
        return pl.BlockSpec(arr.shape, lambda i, _nd=nd: (0,) * _nd)

    out_flat = pl.pallas_call(
        fc_head_kernel,
        out_shape=jax.ShapeDtypeStruct((B, k * k), jnp.float32),
        grid_spec=pltpu.PrefetchScalarGridSpec(
            num_scalar_prefetch=0,
            grid=(1,),
            in_specs=[_full_spec1(a) for a in fc_args],
            out_specs=pl.BlockSpec((B, k * k), lambda i: (0, 0)),
        ),
        compiler_params=pltpu.CompilerParams(
            dimension_semantics=("arbitrary",)),
    )(*fc_args)

    return out_flat.reshape(B, k, k)


# ---------------------------------------------------------------------------
# Parameters & pure-JAX reference (faithful to the PyTorch op order: conv3
# bias+ReLU BEFORE the max-pool; same dtype strategy as the kernel).
# ---------------------------------------------------------------------------
def init_params(key, k):
    """Deterministic synthetic parameters.

    Conv weights are (C_out, C_in) (PyTorch Conv1d weight, squeezed); conv
    biases b1/b2 are (C, 1); b3 is (1, 1024); fc weights are (in, out)
    (PyTorch Linear weight transposed); fc biases are (1, out).
    """
    keys = jax.random.split(key, 12)

    def w(kk, shape, scale=0.05):
        return (scale * jax.random.normal(kk, shape)).astype(jnp.float32)

    w1,  b1  = w(keys[0],  (64,   k)).astype(jnp.bfloat16),    w(keys[1],  (64, 1))
    w2,  b2  = w(keys[2],  (128,  64)).astype(jnp.bfloat16),   w(keys[3],  (128, 1))
    w3,  b3  = w(keys[4],  (1024, 128)).astype(jnp.bfloat16),  w(keys[5],  (1, 1024))
    wf1, bf1 = w(keys[6],  (1024, 512)).astype(jnp.bfloat16),  w(keys[7],  (1, 512))
    wf2, bf2 = w(keys[8],  (512,  256)).astype(jnp.bfloat16),  w(keys[9],  (1, 256))
    wf3, bf3 = w(keys[10], (256,  k * k)).astype(jnp.bfloat16), w(keys[11], (1, k * k))
    return (w1, b1, w2, b2, w3, b3, wf1, bf1, wf2, bf2, wf3, bf3)


def reference_forward(x_bkn, params, k):
    """Pure-JAX reference in the original (PyTorch) op order."""
    (w1, b1, w2, b2, w3, b3, wf1, bf1, wf2, bf2, wf3, bf3) = params
    B, _, N = x_bkn.shape

    def dot32(a, b):
        return jnp.dot(a, b, preferred_element_type=jnp.float32)

    x = jnp.transpose(x_bkn, (0, 2, 1)).astype(jnp.bfloat16).reshape(B * N, k)
    h = jnp.maximum(dot32(x, w1.T) + b1.reshape(1, -1), 0.0).astype(jnp.bfloat16)
    h = jnp.maximum(dot32(h, w2.T) + b2.reshape(1, -1), 0.0).astype(jnp.bfloat16)
    h = jnp.maximum(dot32(h, w3.T) + b3, 0.0)                        # (B*N, 1024) f32
    g = h.reshape(B, N, 1024).max(axis=1)                            # (B, 1024) f32

    f = jnp.maximum(dot32(g.astype(jnp.bfloat16), wf1) + bf1, 0.0).astype(jnp.bfloat16)
    f = jnp.maximum(dot32(f, wf2) + bf2, 0.0).astype(jnp.bfloat16)
    f = dot32(f, wf3) + bf3
    f = f + jnp.eye(k, dtype=jnp.float32).reshape(1, k * k)
    return f.reshape(B, k, k)


if __name__ == "__main__":
    key = jax.random.PRNGKey(0)
    kx1, kx2, kp = jax.random.split(key, 3)

    K, N = 16, 256
    params = init_params(kp, K)

    # Test 1: B=4, tile_n=128 -> grid (4, 1, 2): exercises the running max
    # across N steps and the parallel batch axis.
    B = 4
    x = jax.random.normal(kx1, (B, K, N), dtype=jnp.float32)          # PyTorch NCL layout
    out = jax.block_until_ready(stnkd_forward(x, params, K, tile_n=128))
    ref = reference_forward(x, params, K)
    assert out.shape == (B, K, K), out.shape
    err1 = float(jnp.max(jnp.abs(out - ref)))
    assert jnp.allclose(out, ref, atol=5e-3, rtol=5e-3), err1

    # Test 2: B=1 -> the point axis is split over two parallel grid slots
    # (one per v7x TensorCore); partials are combined in the fc head.
    x2 = jax.random.normal(kx2, (1, K, N), dtype=jnp.float32)
    out2 = jax.block_until_ready(stnkd_forward(x2, params, K, tile_n=128))
    ref2 = reference_forward(x2, params, K)
    assert out2.shape == (1, K, K), out2.shape
    err2 = float(jnp.max(jnp.abs(out2 - ref2)))
    assert jnp.allclose(out2, ref2, atol=5e-3, rtol=5e-3), err2

    print("KERNEL_OK")
</pallas_src>

<mosaic_0001>
module attributes {stable_mosaic.version = 11 : i64} {
  func.func @conv_pool_kernel(%arg0: i32, %arg1: i32, %arg2: i32, %arg3: memref<1x16x128xf32, #tpu.memory_space<vmem>>, %arg4: memref<64x16xbf16, #tpu.memory_space<vmem>>, %arg5: memref<64x1xf32, #tpu.memory_space<vmem>>, %arg6: memref<128x64xbf16, #tpu.memory_space<vmem>>, %arg7: memref<128x1xf32, #tpu.memory_space<vmem>>, %arg8: memref<1024x128xbf16, #tpu.memory_space<vmem>>, %arg9: memref<1x1x1024x1xf32, #tpu.memory_space<vmem>>) attributes {dimension_semantics = [#tpu.dimension_semantics<parallel>, #tpu.dimension_semantics<parallel>, #tpu.dimension_semantics<arbitrary>], iteration_bounds = array<i64: 4, 1, 2>, scalar_prefetch = 0 : i64, scratch_operands = 0 : i64, tpu.core_type = #tpu.core_type<tc>, window_params = [{transform_indices = @transform_0, window_bounds = array<i64: 1, 16, 128>}, {pipeline_mode = #tpu.pipeline_mode<synchronous>, transform_indices = @transform_1, window_bounds = array<i64: 64, 16>}, {pipeline_mode = #tpu.pipeline_mode<synchronous>, transform_indices = @transform_2, window_bounds = array<i64: 64, 1>}, {pipeline_mode = #tpu.pipeline_mode<synchronous>, transform_indices = @transform_3, window_bounds = array<i64: 128, 64>}, {pipeline_mode = #tpu.pipeline_mode<synchronous>, transform_indices = @transform_4, window_bounds = array<i64: 128, 1>}, {pipeline_mode = #tpu.pipeline_mode<synchronous>, transform_indices = @transform_5, window_bounds = array<i64: 1024, 128>}, {transform_indices = @transform_6, window_bounds = array<i64: 1, 1, 1024, 1>}]} {
    %c0 = arith.constant 0 : index
    %c0_0 = arith.constant 0 : index
    %c0_1 = arith.constant 0 : index
    %0 = vector.load %arg3[%c0, %c0_0, %c0_1] : memref<1x16x128xf32, #tpu.memory_space<vmem>>, vector<1x16x128xf32>
    %1 = vector.shape_cast %0 : vector<1x16x128xf32> to vector<16x128xf32>
    %2 = arith.truncf %1 : vector<16x128xf32> to vector<16x128xbf16>
    %c0_2 = arith.constant 0 : index
    %c0_3 = arith.constant 0 : index
    %3 = vector.load %arg4[%c0_2, %c0_3] : memref<64x16xbf16, #tpu.memory_space<vmem>>, vector<64x16xbf16>
    %cst = arith.constant dense<0.000000e+00> : vector<64x128xf32>
    %4 = tpu.matmul %3, %2, %cst {dimension_numbers = #tpu.dot_dimension_numbers<[1], [0], [0], [1], [0, 0, 1, 1], [], []>} : vector<64x16xbf16>, vector<16x128xbf16>, vector<64x128xf32> -> vector<64x128xf32>
    %c0_4 = arith.constant 0 : index
    %c0_5 = arith.constant 0 : index
    %5 = vector.load %arg5[%c0_4, %c0_5] : memref<64x1xf32, #tpu.memory_space<vmem>>, vector<64x1xf32>
    %6 = vector.broadcast %5 : vector<64x1xf32> to vector<64x128xf32>
    %7 = arith.addf %4, %6 : vector<64x128xf32>
    %cst_6 = arith.constant 0.000000e+00 : f32
    %8 = vector.broadcast %cst_6 : f32 to vector<64x128xf32>
    %9 = arith.maximumf %7, %8 : vector<64x128xf32>
    %10 = arith.truncf %9 : vector<64x128xf32> to vector<64x128xbf16>
    %c0_7 = arith.constant 0 : index
    %c0_8 = arith.constant 0 : index
    %11 = vector.load %arg6[%c0_7, %c0_8] : memref<128x64xbf16, #tpu.memory_space<vmem>>, vector<128x64xbf16>
    %cst_9 = arith.constant dense<0.000000e+00> : vector<128x128xf32>
    %12 = tpu.matmul %11, %10, %cst_9 {dimension_numbers = #tpu.dot_dimension_numbers<[1], [0], [0], [1], [0, 0, 1, 1], [], []>} : vector<128x64xbf16>, vector<64x128xbf16>, vector<128x128xf32> -> vector<128x128xf32>
    %c0_10 = arith.constant 0 : index
    %c0_11 = arith.constant 0 : index
    %13 = vector.load %arg7[%c0_10, %c0_11] : memref<128x1xf32, #tpu.memory_space<vmem>>, vector<128x1xf32>
    %14 = vector.broadcast %13 : vector<128x1xf32> to vector<128x128xf32>
    %15 = arith.addf %12, %14 : vector<128x128xf32>
    %cst_12 = arith.constant 0.000000e+00 : f32
    %16 = vector.broadcast %cst_12 : f32 to vector<128x128xf32>
    %17 = arith.maximumf %15, %16 : vector<128x128xf32>
    %18 = arith.truncf %17 : vector<128x128xf32> to vector<128x128xbf16>
    %c0_13 = arith.constant 0 : index
    %c0_14 = arith.constant 0 : index
    %19 = vector.load %arg8[%c0_13, %c0_14] : memref<1024x128xbf16, #tpu.memory_space<vmem>>, vector<1024x128xbf16>
    %cst_15 = arith.constant dense<0.000000e+00> : vector<1024x128xf32>
    %20 = tpu.matmul %19, %18, %cst_15 {dimension_numbers = #tpu.dot_dimension_numbers<[1], [0], [0], [1], [0, 0, 1, 1], [], []>} : vector<1024x128xbf16>, vector<128x128xbf16>, vector<1024x128xf32> -> vector<1024x128xf32>
    %cst_16 = arith.constant dense<0xFF800000> : vector<1024xf32>
    %21 = vector.multi_reduction <maximumf>, %20, %cst_16 [1] : vector<1024x128xf32> to vector<1024xf32>
    %22 = vector.shape_cast %21 : vector<1024xf32> to vector<1024x1xf32>
    %23 = vector.shape_cast %22 : vector<1024x1xf32> to vector<1x1x1024x1xf32>
    %c0_i32 = arith.constant 0 : i32
    %24 = arith.cmpi eq, %arg2, %c0_i32 : i32
    %25 = arith.extui %24 : i1 to i32
    %c0_i32_17 = arith.constant 0 : i32
    %26 = arith.cmpi ne, %25, %c0_i32_17 : i32
    scf.if %26 {
      %c0_20 = arith.constant 0 : index
      %c0_21 = arith.constant 0 : index
      %c0_22 = arith.constant 0 : index
      %c0_23 = arith.constant 0 : index
      %30 = vector.load %arg9[%c0_20, %c0_21, %c0_22, %c0_23] : memref<1x1x1024x1xf32, #tpu.memory_space<vmem>>, vector<1x1x1024x1xf32>
      tpu.vector_store %arg9[%c0_20, %c0_21, %c0_22, %c0_23], %23 {strides = array<i32>} : memref<1x1x1024x1xf32, #tpu.memory_space<vmem>>, vector<1x1x1024x1xf32>,
    } else {
    }
    %c0_i32_18 = arith.constant 0 : i32
    %27 = arith.cmpi sgt, %arg2, %c0_i32_18 : i32
    %28 = arith.extui %27 : i1 to i32
    %c0_i32_19 = arith.constant 0 : i32
    %29 = arith.cmpi ne, %28, %c0_i32_19 : i32
    scf.if %29 {
      %c0_20 = arith.constant 0 : index
      %c0_21 = arith.constant 0 : index
      %c0_22 = arith.constant 0 : index
      %c0_23 = arith.constant 0 : index
      %30 = vector.load %arg9[%c0_20, %c0_21, %c0_22, %c0_23] : memref<1x1x1024x1xf32, #tpu.memory_space<vmem>>, vector<1x1x1024x1xf32>
      %31 = arith.maximumf %30, %23 : vector<1x1x1024x1xf32>
      %c0_24 = arith.constant 0 : index
      %c0_25 = arith.constant 0 : index
      %c0_26 = arith.constant 0 : index
      %c0_27 = arith.constant 0 : index
      %32 = vector.load %arg9[%c0_24, %c0_25, %c0_26, %c0_27] : memref<1x1x1024x1xf32, #tpu.memory_space<vmem>>, vector<1x1x1024x1xf32>
      tpu.vector_store %arg9[%c0_24, %c0_25, %c0_26, %c0_27], %31 {strides = array<i32>} : memref<1x1x1024x1xf32, #tpu.memory_space<vmem>>, vector<1x1x1024x1xf32>,
    } else {
    }
    return
  }
  func.func @transform_0(%arg0: i32, %arg1: i32, %arg2: i32) -> (i32, i32, i32) {
    %c2_i32 = arith.constant 2 : i32
    %0 = arith.muli %arg1, %c2_i32 : i32
    %1 = arith.addi %0, %arg2 : i32
    %c0_i32 = arith.constant 0 : i32
    %c0_i32_0 = arith.constant 0 : i32
    return %arg0, %c0_i32, %1 : i32, i32, i32
  }
  func.func @transform_1(%arg0: i32, %arg1: i32, %arg2: i32) -> (i32, i32) {
    %c0_i32 = arith.constant 0 : i32
    %c0_i32_0 = arith.constant 0 : i32
    %c0_i32_1 = arith.constant 0 : i32
    return %c0_i32, %c0_i32_0 : i32, i32
  }
  func.func @transform_2(%arg0: i32, %arg1: i32, %arg2: i32) -> (i32, i32) {
    %c0_i32 = arith.constant 0 : i32
    %c0_i32_0 = arith.constant 0 : i32
    %c0_i32_1 = arith.constant 0 : i32
    return %c0_i32, %c0_i32_0 : i32, i32
  }
  func.func @transform_3(%arg0: i32, %arg1: i32, %arg2: i32) -> (i32, i32) {
    %c0_i32 = arith.constant 0 : i32
    %c0_i32_0 = arith.constant 0 : i32
    %c0_i32_1 = arith.constant 0 : i32
    return %c0_i32, %c0_i32_0 : i32, i32
  }
  func.func @transform_4(%arg0: i32, %arg1: i32, %arg2: i32) -> (i32, i32) {
    %c0_i32 = arith.constant 0 : i32
    %c0_i32_0 = arith.constant 0 : i32
    %c0_i32_1 = arith.constant 0 : i32
    return %c0_i32, %c0_i32_0 : i32, i32
  }
  func.func @transform_5(%arg0: i32, %arg1: i32, %arg2: i32) -> (i32, i32) {
    %c0_i32 = arith.constant 0 : i32
    %c0_i32_0 = arith.constant 0 : i32
    %c0_i32_1 = arith.constant 0 : i32
    return %c0_i32, %c0_i32_0 : i32, i32
  }
  func.func @transform_6(%arg0: i32, %arg1: i32, %arg2: i32) -> (i32, i32, i32, i32) {
    %c0_i32 = arith.constant 0 : i32
    %c0_i32_0 = arith.constant 0 : i32
    %c0_i32_1 = arith.constant 0 : i32
    return %arg1, %arg0, %c0_i32, %c0_i32_0 : i32, i32, i32, i32
  }
}

</mosaic_0001>

<llo_original>
// kernel: tpu_custom_call.1
$region0: #{tpu_custom_call.1}
  #allocation0 [shape = 'u32[]', space=smem, size = 0x4, offset = 0x4, fixed_abs, tag = 'smem constant byte address 0x4 - core index']
  #allocation1 [shape = 'u32[72,128]{1,0:T(1,128)}', space=vmem, size = 0x9000, scoped, tag = 'internal scratch']
  %s0 = inlined_call_operand.hbm [shape: f32[4,16,256], index: 0, kind: input, shape index: {}]
  %s1 = inlined_call_operand.vmem [shape: bf16[64,16], index: 1, kind: input, shape index: {}]
  %s2 = inlined_call_operand.vmem [shape: f32[64,1], index: 2, kind: input, shape index: {}]
  %s3 = inlined_call_operand.vmem [shape: bf16[128,64], index: 3, kind: input, shape index: {}]
  %s4 = inlined_call_operand.vmem [shape: f32[128,1], index: 4, kind: input, shape index: {}]
  %s5 = inlined_call_operand.hbm [shape: bf16[1024,128], index: 5, kind: input, shape index: {}]
  %s6 = inlined_call_operand.vmem [shape: f32[1,4,1024,1], index: 6, kind: output, shape index: {}]
  %s7 = sld [smem:[#allocation0]]
  $region73: #{tpu_custom_call.1} parent=0
    _
  %s9 = ssub.s32 1, %s7
  %s10 = scalar_select 0, %s9, %s7
  $region1: #{tpu_custom_call.1} parent=0
    #allocation2 [shape = 'u8[16384]{0}', space=vmem, size = 0x4000, scoped, tag = 'input window, operand 0']
    #allocation3 [shape = 's32[2]{0}', space=sflag, size = 0x8, scoped, tag = 'scoped memory for tpu_custom_call.1']
    #allocation4 [shape = 'u8[262144]{0}', space=vmem, size = 0x40000, scoped, tag = 'input window, operand 5, single buffered']
    #allocation5 [shape = 's32[1]{0}', space=sflag, size = 0x4, scoped, tag = 'scoped memory for tpu_custom_call.1']
    %11 = vsyncpa [#allocation3], 0
    %s12 = scalar_lea.sflag [#allocation3], 1
    %13 = vsyncpa %s12, 0
    %14 = vsyncpa [#allocation5], 0
    loop: start=0, step=1, limit=10
    $region2: #{tpu_custom_call.1} parent=1 // loop_pre_header
      _
    $region3: #{tpu_custom_call.1} parent=1 // loop_header
      %s16 = sphi 0, %s20
      %p17 = scmp.ge.s32.totalorder %s16, 10
      %s23 = sphi 0, %s42
      %s24 = sphi 0, %s38
      %s25 = sphi 0, %s34
      %s26 = sphi 0, %s23
      %s27 = sphi 0, %s24
      %s28 = sphi 0, %s25
      %s29 = sphi 0, %s26
      %s30 = sphi 0, %s27
      %s31 = sphi 0, %s28
      %s51 = sphi 0, %s53
      %s54 = sphi 0, %s51
      %s55 = sphi 0, %s54
      %s71 = sphi 0, %s55
      %s75 = sphi 0, %s75
      %s77 = sphi 0, %s75
      %s78 = sphi 0, %s77
      %s92 = sphi 0, %s78
      %s96 = sphi 0, %s96
      %s98 = sphi 0, %s96
      %s99 = sphi 0, %s98
      %s113 = sphi 0, %s99
      %s117 = sphi 0, %s117
      %s119 = sphi 0, %s117
      %s120 = sphi 0, %s119
      %s134 = sphi 0, %s120
      %s138 = sphi 0, %s138
      %s140 = sphi 0, %s138
      %s141 = sphi 0, %s140
      %s155 = sphi 0, %s141
      %s159 = sphi 0, %s159
      %s161 = sphi 0, %s159
      %s162 = sphi 0, %s161
      %s176 = sphi 0, %s162
      %s184 = sphi 0, %s186
      %s187 = sphi 0, %s184
      %s188 = sphi 0, %s187
      %s204 = sphi 0, %s188
    $region4: #{tpu_custom_call.1} parent=1 // loop_header_branch
      %19 = sbr.rel (%p17) target = $region8
    $region5: #{tpu_custom_call.1} parent=1 // loop_body
      %s21 = ssub.s32 %s16, 1
      %s22 = ssub.s32 %s16, 2
      %s32 = sadd.s32 1, %s25
      %p33 = scmp.ge.s32.totalorder %s32, 2
      %s34 = scalar_select %p33, 0, %s32
      %s35 = sadd.s32 1, %s24
      %s36 = scalar_select %p33, %s35, %s24
      %p37 = scmp.ge.s32.totalorder %s36, 1
      %s38 = scalar_select %p37, 0, %s36
      %s39 = sadd.s32 1, %s23
      %s40 = scalar_select %p37, %s39, %s23
      %p41 = scmp.ge.s32.totalorder %s40, 4
      %s42 = scalar_select %p41, 0, %s40
      %s43 = smul.u32 %s24, 2
      %s44 = sadd.s32 %s43, %s25
      %s45 = smul.u32 %s38, 2
      %s46 = sadd.s32 %s45, %s34
      %s47 = ssub.s32 %s23, %s42
      %s48 = ssub.s32 %s44, %s46
      %s49 = sor.u32 %s47, %s48
      %p50 = scmp.eq.s32.totalorder %s49, 0
      %s52 = sadd.s32 %s51, 1
      %s53 = scalar_select %p50, %s51, %s52
      %p56 = pneg %p50
      %p57 = scmp.eq.s32.totalorder %s16, 7
      %p58 = por %p56, %p57
      %p59 = scmp.ne.s32.totalorder %s51, %s54
      %p60 = scmp.eq.s32.totalorder %s16, 0
      %p61 = por %p59, %p60
      %p62 = scmp.ne.s32.totalorder %s51, %s54
      %p63 = scmp.eq.s32.totalorder %s21, 7
      %p64 = por %p62, %p63
      %p65 = scmp.ne.s32.totalorder %s54, %s55
      %p66 = scmp.eq.s32.totalorder %s21, 0
      %p67 = por %p65, %p66
      %p68 = scmp.ne.s32.totalorder %s54, %s55
      %p69 = scmp.eq.s32.totalorder %s22, 7
      %p70 = por %p68, %p69
      %p72 = scmp.ne.s32.totalorder %s55, %s71
      %p73 = scmp.eq.s32.totalorder %s22, 0
      %p74 = por %p72, %p73
      %s76 = sadd.s32 %s75, 1
      %p79 = scmp.eq.s32.totalorder %s16, 7
      %p80 = scmp.ne.s32.totalorder %s75, %s77
      %p81 = scmp.eq.s32.totalorder %s16, 0
      %p82 = por %p80, %p81
      %p83 = scmp.ne.s32.totalorder %s75, %s77
      %p84 = scmp.eq.s32.totalorder %s21, 7
      %p85 = por %p83, %p84
      %p86 = scmp.ne.s32.totalorder %s77, %s78
      %p87 = scmp.eq.s32.totalorder %s21, 0
      %p88 = por %p86, %p87
      %p89 = scmp.ne.s32.totalorder %s77, %s78
      %p90 = scmp.eq.s32.totalorder %s22, 7
      %p91 = por %p89, %p90
      %p93 = scmp.ne.s32.totalorder %s78, %s92
      %p94 = scmp.eq.s32.totalorder %s22, 0
      %p95 = por %p93, %p94
      %s97 = sadd.s32 %s96, 1
      %p100 = scmp.eq.s32.totalorder %s16, 7
      %p101 = scmp.ne.s32.totalorder %s96, %s98
      %p102 = scmp.eq.s32.totalorder %s16, 0
      %p103 = por %p101, %p102
      %p104 = scmp.ne.s32.totalorder %s96, %s98
      %p105 = scmp.eq.s32.totalorder %s21, 7
      %p106 = por %p104, %p105
      %p107 = scmp.ne.s32.totalorder %s98, %s99
      %p108 = scmp.eq.s32.totalorder %s21, 0
      %p109 = por %p107, %p108
      %p110 = scmp.ne.s32.totalorder %s98, %s99
      %p111 = scmp.eq.s32.totalorder %s22, 7
      %p112 = por %p110, %p111
      %p114 = scmp.ne.s32.totalorder %s99, %s113
      %p115 = scmp.eq.s32.totalorder %s22, 0
      %p116 = por %p114, %p115
      %s118 = sadd.s32 %s117, 1
      %p121 = scmp.eq.s32.totalorder %s16, 7
      %p122 = scmp.ne.s32.totalorder %s117, %s119
      %p123 = scmp.eq.s32.totalorder %s16, 0
      %p124 = por %p122, %p123
      %p125 = scmp.ne.s32.totalorder %s117, %s119
      %p126 = scmp.eq.s32.totalorder %s21, 7
      %p127 = por %p125, %p126
      %p128 = scmp.ne.s32.totalorder %s119, %s120
      %p129 = scmp.eq.s32.totalorder %s21, 0
      %p130 = por %p128, %p129
      %p131 = scmp.ne.s32.totalorder %s119, %s120
      %p132 = scmp.eq.s32.totalorder %s22, 7
      %p133 = por %p131, %p132
      %p135 = scmp.ne.s32.totalorder %s120, %s134
      %p136 = scmp.eq.s32.totalorder %s22, 0
      %p137 = por %p135, %p136
      %s139 = sadd.s32 %s138, 1
      %p142 = scmp.eq.s32.totalorder %s16, 7
      %p143 = scmp.ne.s32.totalorder %s138, %s140
      %p144 = scmp.eq.s32.totalorder %s16, 0
      %p145 = por %p143, %p144
      %p146 = scmp.ne.s32.totalorder %s138, %s140
      %p147 = scmp.eq.s32.totalorder %s21, 7
      %p148 = por %p146, %p147
      %p149 = scmp.ne.s32.totalorder %s140, %s141
      %p150 = scmp.eq.s32.totalorder %s21, 0
      %p151 = por %p149, %p150
      %p152 = scmp.ne.s32.totalorder %s140, %s141
      %p153 = scmp.eq.s32.totalorder %s22, 7
      %p154 = por %p152, %p153
      %p156 = scmp.ne.s32.totalorder %s141, %s155
      %p157 = scmp.eq.s32.totalorder %s22, 0
      %p158 = por %p156, %p157
      %s160 = sadd.s32 %s159, 1
      %p163 = scmp.eq.s32.totalorder %s16, 7
      %p164 = scmp.ne.s32.totalorder %s159, %s161
      %p165 = scmp.eq.s32.totalorder %s16, 0
      %p166 = por %p164, %p165
      %p167 = scmp.ne.s32.totalorder %s159, %s161
      %p168 = scmp.eq.s32.totalorder %s21, 7
      %p169 = por %p167, %p168
      %p170 = scmp.ne.s32.totalorder %s161, %s162
      %p171 = scmp.eq.s32.totalorder %s21, 0
      %p172 = por %p170, %p171
      %p173 = scmp.ne.s32.totalorder %s161, %s162
      %p174 = scmp.eq.s32.totalorder %s22, 7
      %p175 = por %p173, %p174
      %p177 = scmp.ne.s32.totalorder %s162, %s176
      %p178 = scmp.eq.s32.totalorder %s22, 0
      %p179 = por %p177, %p178
      %s180 = ssub.s32 %s24, %s38
      %s181 = ssub.s32 %s23, %s42
      %s182 = sor.u32 %s180, %s181
      %p183 = scmp.eq.s32.totalorder %s182, 0
      %s185 = sadd.s32 %s184, 1
      %s186 = scalar_select %p183, %s184, %s185
      %p189 = pneg %p183
      %p190 = scmp.eq.s32.totalorder %s16, 7
      %p191 = por %p189, %p190
      %p192 = scmp.ne.s32.totalorder %s184, %s187
      %p193 = scmp.eq.s32.totalorder %s16, 0
      %p194 = por %p192, %p193
      %p195 = scmp.ne.s32.totalorder %s184, %s187
      %p196 = scmp.eq.s32.totalorder %s21, 7
      %p197 = por %p195, %p196
      %p198 = scmp.ne.s32.totalorder %s187, %s188
      %p199 = scmp.eq.s32.totalorder %s21, 0
      %p200 = por %p198, %p199
      %p201 = scmp.ne.s32.totalorder %s187, %s188
      %p202 = scmp.eq.s32.totalorder %s22, 7
      %p203 = por %p201, %p202
      %p205 = scmp.ne.s32.totalorder %s188, %s204
      %p206 = scmp.eq.s32.totalorder %s22, 0
      %p207 = por %p205, %p206
      %p208 = scmp.le.s32.totalorder 1, %s16
      %p209 = scmp.lt.s32.totalorder %s16, 9
      %p210 = pnand %p208, %p209
      %p211 = pneg %p210
      // Predicated region
      $region9: #{tpu_custom_call.1} parent=5 // pred_check
        _
      $region10: #{tpu_custom_call.1} parent=5 // pred_check_branch
        %213 = sbr.rel (%p210) target = $region12
      $region11: #{tpu_custom_call.1} parent=5 // pred_region
        %s214 = ssub.s32 %s16, 1
        // Predicated region
        $region13: #{tpu_custom_call.1} parent=11 // pred_check
          %p215 = pneg %p88
        $region14: #{tpu_custom_call.1} parent=11 // pred_check_branch
          %217 = sbr.rel (%p215) target = $region16
        $region15: #{tpu_custom_call.1} parent=11 // pred_region
          _
        $region16: #{tpu_custom_call.1} parent=11 // pred_fallthru
          _
        // Predicated region
        $region17: #{tpu_custom_call.1} parent=11 // pred_check
          %p218 = pneg %p109
        $region18: #{tpu_custom_call.1} parent=11 // pred_check_branch
          %220 = sbr.rel (%p218) target = $region20
        $region19: #{tpu_custom_call.1} parent=11 // pred_region
          _
        $region20: #{tpu_custom_call.1} parent=11 // pred_fallthru
          _
        // Predicated region
        $region21: #{tpu_custom_call.1} parent=11 // pred_check
          %p221 = pneg %p130
        $region22: #{tpu_custom_call.1} parent=11 // pred_check_branch
          %223 = sbr.rel (%p221) target = $region24
        $region23: #{tpu_custom_call.1} parent=11 // pred_region
          _
        $region24: #{tpu_custom_call.1} parent=11 // pred_fallthru
          _
        // Predicated region
        $region25: #{tpu_custom_call.1} parent=11 // pred_check
          %p224 = pneg %p151
        $region26: #{tpu_custom_call.1} parent=11 // pred_check_branch
          %226 = sbr.rel (%p224) target = $region28
        $region27: #{tpu_custom_call.1} parent=11 // pred_region
          _
        $region28: #{tpu_custom_call.1} parent=11 // pred_fallthru
          _
        // Predicated region
        $region29: #{tpu_custom_call.1} parent=11 // pred_check
          %p227 = pneg %p172
        $region30: #{tpu_custom_call.1} parent=11 // pred_check_branch
          %229 = sbr.rel (%p227) target = $region32
        $region31: #{tpu_custom_call.1} parent=11 // pred_region
          %231 = vsyncadd [#allocation5], 0
          %s232 = sshll.u32 %s5, 4
          %s233 = int_to_ptr.hbm [resolvable:$true] %s232
          %s234 = sshll.u32 [#allocation4], 4
          %s235 = int_to_ptr.vmem [resolvable:$true] %s234
          %240 = dma.hbm_to_vmem [thread:$0]  %s233, 8192, %s235, [#allocation5], 64, 64, 4
        $region32: #{tpu_custom_call.1} parent=11 // pred_fallthru
          _
      $region12: #{tpu_custom_call.1} parent=5 // pred_fallthru
        _
      %p241 = scmp.lt.s32.totalorder %s16, 8
      // Predicated region
      $region33: #{tpu_custom_call.1} parent=5 // pred_check
        %p242 = pneg %p241
      $region34: #{tpu_custom_call.1} parent=5 // pred_check_branch
        %244 = sbr.rel (%p242) target = $region36
      $region35: #{tpu_custom_call.1} parent=5 // pred_region
        // Predicated region
        $region37: #{tpu_custom_call.1} parent=35 // pred_check
          %p245 = pneg %p61
        $region38: #{tpu_custom_call.1} parent=35 // pred_check_branch
          %247 = sbr.rel (%p245) target = $region40
        $region39: #{tpu_custom_call.1} parent=35 // pred_region
          %s248 = sand.u32 %s51, 1
          %s249 = scalar_lea.sflag [#allocation3], %s248
          %s250 = sand.u32 %s51, 1
          %s251 = smul.addr %s250, 16
          %s252 = scalar_lea.vmem [#allocation2], %s251
          %s253 = smul.u32 %s24, 2
          %s254 = sadd.s32 %s253, %s25
          %256 = vsyncadd %s249, 0
          %s257 = smul.addr %s23, 4
          %s258 = sadd.s32 %s254, %s257
          %s259 = smul.addr %s258, 8
          %s260 = scalar_lea.hbm %s0, %s259
          %s261 = sshll.u32 %s260, 4
          %s262 = int_to_ptr.hbm [resolvable:$true] %s261
          %s263 = sshll.u32 %s252, 4
          %s264 = int_to_ptr.vmem [resolvable:$true] %s263
          %269 = dma.hbm_to_vmem [thread:$0]  %s262, 256, %s264, %s249, 256, 128, 8
        $region40: #{tpu_custom_call.1} parent=35 // pred_fallthru
          _
      $region36: #{tpu_custom_call.1} parent=5 // pred_fallthru
        _
      %p270 = scmp.le.s32.totalorder 1, %s16
      %p271 = scmp.lt.s32.totalorder %s16, 9
      %p272 = pnand %p270, %p271
      %p273 = pneg %p272
      // Predicated region
      $region41: #{tpu_custom_call.1} parent=5 // pred_check
        _
      $region42: #{tpu_custom_call.1} parent=5 // pred_check_branch
        %275 = sbr.rel (%p272) target = $region44
      $region43: #{tpu_custom_call.1} parent=5 // pred_region
        %s276 = ssub.s32 %s16, 1
        %s277 = sand.u32 %s54, 1
        %s278 = scalar_lea.sflag [#allocation3], %s277
        %s279 = sand.u32 %s54, 1
        %s280 = smul.addr %s279, 16
        %s281 = scalar_lea.vmem [#allocation2], %s280
        // Predicated region
        $region45: #{tpu_custom_call.1} parent=43 // pred_check
          %p282 = pneg %p67
        $region46: #{tpu_custom_call.1} parent=43 // pred_check_branch
          %284 = sbr.rel (%p282) target = $region48
        $region47: #{tpu_custom_call.1} parent=43 // pred_region
          %286 = dma.done %s278, 256
        $region48: #{tpu_custom_call.1} parent=43 // pred_fallthru
          _
        // Predicated region
        $region49: #{tpu_custom_call.1} parent=43 // pred_check
          %p287 = pneg %p172
        $region50: #{tpu_custom_call.1} parent=43 // pred_check_branch
          %289 = sbr.rel (%p287) target = $region52
        $region51: #{tpu_custom_call.1} parent=43 // pred_region
          %291 = dma.done [#allocation5], 8192
        $region52: #{tpu_custom_call.1} parent=43 // pred_fallthru
          _
        %s292 = sand.u32 %s54, 1
        %s293 = scalar_lea.sflag [#allocation3], %s292
        %s294 = sand.u32 %s54, 1
        %s295 = smul.addr %s294, 16
        %s296 = scalar_lea.vmem [#allocation2], %s295
        %p297 = pneg %p67
        %p298 = pneg %p64
        %p299 = pneg %p88
        %p300 = pneg %p85
        %p301 = pneg %p109
        %p302 = pneg %p106
        %p303 = pneg %p130
        %p304 = pneg %p127
        %p305 = pneg %p151
        %p306 = pneg %p148
        %p307 = pneg %p172
        %p308 = pneg %p169
        %p309 = pneg %p200
        %p310 = pneg %p197
        %p311 = scmp.lt.s32.totalorder %s27, 0
        %s312 = scalar_select %p311, %s27, 0
        %p313 = scmp.lt.s32.totalorder %s26, 3
        %s314 = scalar_select %p313, %s26, 3
        %s315 = smul.addr %s314, 128
        %s316 = smul.addr %s312, 512
        %s317 = sadd.s32 %s315, %s316
        %s318 = smul.addr %s317, 8
        %s319 = scalar_lea.vmem %s6, %s318
        %s320 = smul.u32 %s27, 2
        %s321 = sadd.s32 %s320, %s28
        %p322 = scmp.lt.s32.totalorder %s27, 0
        %s323 = scalar_select %p322, %s27, 0
        %p324 = scmp.lt.s32.totalorder %s26, 3
        %s325 = scalar_select %p324, %s26, 3
        %s326 = smul.addr %s325, 128
        %s327 = smul.addr %s323, 512
        %s328 = sadd.s32 %s326, %s327
        %s329 = smul.addr %s328, 8
        %s330 = scalar_lea.vmem %s6, %s329
        %v332 = vld [vmem:[%s281] sm:$0xff]
        %v333 = vld [vmem:[%s281 + $0x8] sm:$0xff]
        %v334 = vpack.c.bf16 %v333, %v332
        %v335 = vld [vmem:[%s1] sm:$0xf]
        %v336 = vld [vmem:[%s1 + $0x4] sm:$0xf]
        %v337 = vld [vmem:[%s1 + $0x8] sm:$0xf]
        %v338 = vld [vmem:[%s1 + $0xc] sm:$0xf]
        %v339 = vld [vmem:[%s1 + $0x10] sm:$0xf]
        %v340 = vld [vmem:[%s1 + $0x14] sm:$0xf]
        %v341 = vld [vmem:[%s1 + $0x18] sm:$0xf]
        %v342 = vld [vmem:[%s1 + $0x1c] sm:$0xf]
        %v343 = vld [vmem:[%s2] sm:$0xff]
        %v344 = vld [vmem:[%s2 + $0x8] sm:$0xff]
        %v345 = vld [vmem:[%s2 + $0x10] sm:$0xff]
        %v346 = vld [vmem:[%s2 + $0x18] sm:$0xff]
        %v347 = vld [vmem:[%s2 + $0x20] sm:$0xff]
        %v348 = vld [vmem:[%s2 + $0x28] sm:$0xff]
        %v349 = vld [vmem:[%s2 + $0x30] sm:$0xff]
        %v350 = vld [vmem:[%s2 + $0x38] sm:$0xff]
        %352 = vset.pattern.permute.xlu0 0
        %353 = vperm.xlu0 %352, %v343
        %v354 = vpop.permute.xlu0 %353
        %357 = vset.pattern.permute.xlu0 0
        %358 = vperm.xlu0 %357, %v344
        %v359 = vpop.permute.xlu0 %358
        %362 = vset.pattern.permute.xlu0 0
        %363 = vperm.xlu0 %362, %v345
        %v364 = vpop.permute.xlu0 %363
        %367 = vset.pattern.permute.xlu0 0
        %368 = vperm.xlu0 %367, %v346
        %v369 = vpop.permute.xlu0 %368
        %372 = vset.pattern.permute.xlu0 0
        %373 = vperm.xlu0 %372, %v347
        %v374 = vpop.permute.xlu0 %373
        %377 = vset.pattern.permute.xlu0 0
        %378 = vperm.xlu0 %377, %v348
        %v379 = vpop.permute.xlu0 %378
        %382 = vset.pattern.permute.xlu0 0
        %383 = vperm.xlu0 %382, %v349
        %v384 = vpop.permute.xlu0 %383
        %387 = vset.pattern.permute.xlu0 0
        %388 = vperm.xlu0 %387, %v350
        %v389 = vpop.permute.xlu0 %388
        %v399 = vunpack.c.l.b16 %v335
        %v400 = vunpack.c.l.b16 %v336
        %v401 = vunpack.c.l.b16 %v337
        %v402 = vunpack.c.l.b16 %v338
        %v403 = vunpack.c.l.b16 %v339
        %v404 = vunpack.c.l.b16 %v340
        %v405 = vunpack.c.l.b16 %v341
        %v406 = vunpack.c.l.b16 %v342
        %v407 = vpack.c.b16 %v400, %v399
        %v408 = vpack.c.b16 %v402, %v401
        %v409 = vpack.c.b16 %v404, %v403
        %v410 = vpack.c.b16 %v406, %v405
        %vm411 = vcmask 130048
        %v413 = vsel %vm411, %v407, 0
        %v416 = vsel %vm411, %v408, 0
        %v419 = vsel %vm411, %v409, 0
        %v422 = vsel %vm411, %v410, 0
        %424 = vmatpush.bf16.msra.mxu0 0
        %425 = vmatpush.bf16.msra.mxu0 0
        %426 = vmatpush.bf16.msra.mxu0 0
        %427 = vmatpush.bf16.msra.mxu0 0
        %428 = vmatpush.bf16.msra.mxu0 0
        %429 = vmatpush.bf16.msra.mxu0 0
        %430 = vmatpush.bf16.msra.mxu0 0
        %431 = vmatpush.bf16.msra.mxu0 %v334
        %432 = vmatmul.bf16.gmra.mxu0 %v413
        %v433 = vpop.f32.mrf.mxu0
        %v434 = vadd.f32 %v354, %v433
        %v435 = vpop.f32.mrf.mxu0
        %v436 = vadd.f32 %v359, %v435
        %437 = vmatmul.bf16.gmra.mxu0 %v416
        %v438 = vpop.f32.mrf.mxu0
        %v439 = vadd.f32 %v364, %v438
        %v440 = vpop.f32.mrf.mxu0
        %v441 = vadd.f32 %v369, %v440
        %442 = vmatmul.bf16.gmra.mxu0 %v419
        %v443 = vpop.f32.mrf.mxu0
        %v444 = vadd.f32 %v374, %v443
        %v445 = vpop.f32.mrf.mxu0
        %v446 = vadd.f32 %v379, %v445
        %447 = vmatmul.bf16.gmra.mxu0 %v422
        %v448 = vpop.f32.mrf.mxu0
        %v449 = vadd.f32 %v384, %v448
        %v450 = vpop.f32.mrf.mxu0
        %v451 = vadd.f32 %v389, %v450
        %452 = vdwg.mxu0
        %v453 = vmax.f32 %v434, 0.0
        %v454 = vmax.f32 %v436, 0.0
        %v455 = vmax.f32 %v439, 0.0
        %v456 = vmax.f32 %v441, 0.0
        %v457 = vmax.f32 %v444, 0.0
        %v458 = vmax.f32 %v446, 0.0
        %v459 = vmax.f32 %v449, 0.0
        %v460 = vmax.f32 %v451, 0.0
        %v461 = vpack.c.bf16 %v454, %v453
        %v462 = vpack.c.bf16 %v456, %v455
        %v463 = vpack.c.bf16 %v458, %v457
        %v464 = vpack.c.bf16 %v460, %v459
        %v465 = vld [vmem:[%s3] sm:$0xf]
        %v466 = vld [vmem:[%s3 + $0x4] sm:$0xf]
        %v467 = vld [vmem:[%s3 + $0x8] sm:$0xf]
        %v468 = vld [vmem:[%s3 + $0xc] sm:$0xf]
        %v469 = vld [vmem:[%s3 + $0x10] sm:$0xf]
        %v470 = vld [vmem:[%s3 + $0x14] sm:$0xf]
        %v471 = vld [vmem:[%s3 + $0x18] sm:$0xf]
        %v472 = vld [vmem:[%s3 + $0x1c] sm:$0xf]
        %v473 = vld [vmem:[%s3 + $0x20] sm:$0xf]
        %v474 = vld [vmem:[%s3 + $0x24] sm:$0xf]
        %v475 = vld [vmem:[%s3 + $0x28] sm:$0xf]
        %v476 = vld [vmem:[%s3 + $0x2c] sm:$0xf]
        %v477 = vld [vmem:[%s3 + $0x30] sm:$0xf]
        %v478 = vld [vmem:[%s3 + $0x34] sm:$0xf]
        %v479 = vld [vmem:[%s3 + $0x38] sm:$0xf]
        %v480 = vld [vmem:[%s3 + $0x3c] sm:$0xf]
        %v481 = vld [vmem:[%s4] sm:$0xff]
        %v482 = vld [vmem:[%s4 + $0x8] sm:$0xff]
        %v483 = vld [vmem:[%s4 + $0x10] sm:$0xff]
        %v484 = vld [vmem:[%s4 + $0x18] sm:$0xff]
        %v485 = vld [vmem:[%s4 + $0x20] sm:$0xff]
        %v486 = vld [vmem:[%s4 + $0x28] sm:$0xff]
        %v487 = vld [vmem:[%s4 + $0x30] sm:$0xff]
        %v488 = vld [vmem:[%s4 + $0x38] sm:$0xff]
        %v489 = vld [vmem:[%s4 + $0x40] sm:$0xff]
        %v490 = vld [vmem:[%s4 + $0x48] sm:$0xff]
        %v491 = vld [vmem:[%s4 + $0x50] sm:$0xff]
        %v492 = vld [vmem:[%s4 + $0x58] sm:$0xff]
        %v493 = vld [vmem:[%s4 + $0x60] sm:$0xff]
        %v494 = vld [vmem:[%s4 + $0x68] sm:$0xff]
        %v495 = vld [vmem:[%s4 + $0x70] sm:$0xff]
        %v496 = vld [vmem:[%s4 + $0x78] sm:$0xff]
        %498 = vset.pattern.permute.xlu0 0
        %499 = vperm.xlu0 %498, %v481
        %v500 = vpop.permute.xlu0 %499
        %503 = vset.pattern.permute.xlu0 0
        %504 = vperm.xlu0 %503, %v482
        %v505 = vpop.permute.xlu0 %504
        %508 = vset.pattern.permute.xlu0 0
        %509 = vperm.xlu0 %508, %v483
        %v510 = vpop.permute.xlu0 %509
        %513 = vset.pattern.permute.xlu0 0
        %514 = vperm.xlu0 %513, %v484
        %v515 = vpop.permute.xlu0 %514
        %518 = vset.pattern.permute.xlu0 0
        %519 = vperm.xlu0 %518, %v485
        %v520 = vpop.permute.xlu0 %519
        %523 = vset.pattern.permute.xlu0 0
        %524 = vperm.xlu0 %523, %v486
        %v525 = vpop.permute.xlu0 %524
        %528 = vset.pattern.permute.xlu0 0
        %529 = vperm.xlu0 %528, %v487
        %v530 = vpop.permute.xlu0 %529
        %533 = vset.pattern.permute.xlu0 0
        %534 = vperm.xlu0 %533, %v488
        %v535 = vpop.permute.xlu0 %534
        %538 = vset.pattern.permute.xlu0 0
        %539 = vperm.xlu0 %538, %v489
        %v540 = vpop.permute.xlu0 %539
        %543 = vset.pattern.permute.xlu0 0
        %544 = vperm.xlu0 %543, %v490
        %v545 = vpop.permute.xlu0 %544
        %548 = vset.pattern.permute.xlu0 0
        %549 = vperm.xlu0 %548, %v491
        %v550 = vpop.permute.xlu0 %549
        %553 = vset.pattern.permute.xlu0 0
        %554 = vperm.xlu0 %553, %v492
        %v555 = vpop.permute.xlu0 %554
        %558 = vset.pattern.permute.xlu0 0
        %559 = vperm.xlu0 %558, %v493
        %v560 = vpop.permute.xlu0 %559
        %563 = vset.pattern.permute.xlu0 0
        %564 = vperm.xlu0 %563, %v494
        %v565 = vpop.permute.xlu0 %564
        %568 = vset.pattern.permute.xlu0 0
        %569 = vperm.xlu0 %568, %v495
        %v570 = vpop.permute.xlu0 %569
        %573 = vset.pattern.permute.xlu0 0
        %574 = vperm.xlu0 %573, %v496
        %v575 = vpop.permute.xlu0 %574
        %v593 = vunpack.c.l.b16 %v465
        %v594 = vunpack.c.l.b16 %v466
        %v595 = vunpack.c.l.b16 %v467
        %v596 = vunpack.c.l.b16 %v468
        %v597 = vunpack.c.l.b16 %v469
        %v598 = vunpack.c.l.b16 %v470
        %v599 = vunpack.c.l.b16 %v471
        %v600 = vunpack.c.l.b16 %v472
        %v601 = vunpack.c.l.b16 %v473
        %v602 = vunpack.c.l.b16 %v474
        %v603 = vunpack.c.l.b16 %v475
        %v604 = vunpack.c.l.b16 %v476
        %v605 = vunpack.c.l.b16 %v477
        %v606 = vunpack.c.l.b16 %v478
        %v607 = vunpack.c.l.b16 %v479
        %v608 = vunpack.c.l.b16 %v480
        %v609 = vpack.c.b16 %v594, %v593
        %v610 = vpack.c.b16 %v596, %v595
        %v611 = vpack.c.b16 %v598, %v597
        %v612 = vpack.c.b16 %v600, %v599
        %v613 = vpack.c.b16 %v602, %v601
        %v614 = vpack.c.b16 %v604, %v603
        %v615 = vpack.c.b16 %v606, %v605
        %v616 = vpack.c.b16 %v608, %v607
        %vm617 = vcmask 523264
        %v619 = vsel %vm617, %v609, 0
        %v622 = vsel %vm617, %v610, 0
        %v625 = vsel %vm617, %v611, 0
        %v628 = vsel %vm617, %v612, 0
        %v631 = vsel %vm617, %v613, 0
        %v634 = vsel %vm617, %v614, 0
        %v637 = vsel %vm617, %v615, 0
        %v640 = vsel %vm617, %v616, 0
        %642 = vmatpush.bf16.msra.mxu0 0
        %643 = vmatpush.bf16.msra.mxu0 0
        %644 = vmatpush.bf16.msra.mxu0 0
        %645 = vmatpush.bf16.msra.mxu0 0
        %646 = vmatpush.bf16.msra.mxu0 %v464
        %647 = vmatpush.bf16.msra.mxu0 %v463
        %648 = vmatpush.bf16.msra.mxu0 %v462
        %649 = vmatpush.bf16.msra.mxu0 %v461
        %650 = vmatmul.bf16.gmra.mxu0 %v619
        %v651 = vpop.f32.mrf.mxu0
        %v652 = vadd.f32 %v500, %v651
        %v653 = vpop.f32.mrf.mxu0
        %v654 = vadd.f32 %v505, %v653
        %655 = vmatmul.bf16.gmra.mxu0 %v622
        %v656 = vpop.f32.mrf.mxu0
        %v657 = vadd.f32 %v510, %v656
        %v658 = vpop.f32.mrf.mxu0
        %v659 = vadd.f32 %v515, %v658
        %660 = vmatmul.bf16.gmra.mxu0 %v625
        %v661 = vpop.f32.mrf.mxu0
        %v662 = vadd.f32 %v520, %v661
        %v663 = vpop.f32.mrf.mxu0
        %v664 = vadd.f32 %v525, %v663
        %665 = vmatmul.bf16.gmra.mxu0 %v628
        %v666 = vpop.f32.mrf.mxu0
        %v667 = vadd.f32 %v530, %v666
        %v668 = vpop.f32.mrf.mxu0
        %v669 = vadd.f32 %v535, %v668
        %670 = vmatmul.bf16.gmra.mxu0 %v631
        %v671 = vpop.f32.mrf.mxu0
        %v672 = vadd.f32 %v540, %v671
        %v673 = vpop.f32.mrf.mxu0
        %v674 = vadd.f32 %v545, %v673
        %675 = vmatmul.bf16.gmra.mxu0 %v634
        %v676 = vpop.f32.mrf.mxu0
        %v677 = vadd.f32 %v550, %v676
        %v678 = vpop.f32.mrf.mxu0
        %v679 = vadd.f32 %v555, %v678
        %680 = vmatmul.bf16.gmra.mxu0 %v637
        %v681 = vpop.f32.mrf.mxu0
        %v682 = vadd.f32 %v560, %v681
        %v683 = vpop.f32.mrf.mxu0
        %v684 = vadd.f32 %v565, %v683
        %685 = vmatmul.bf16.gmra.mxu0 %v640
        %v686 = vpop.f32.mrf.mxu0
        %v687 = vadd.f32 %v570, %v686
        %v688 = vpop.f32.mrf.mxu0
        %v689 = vadd.f32 %v575, %v688
        %690 = vdwg.mxu0
        %v691 = vmax.f32 %v652, 0.0
        %v692 = vmax.f32 %v654, 0.0
        %v693 = vmax.f32 %v657, 0.0
        %v694 = vmax.f32 %v659, 0.0
        %v695 = vmax.f32 %v662, 0.0
        %v696 = vmax.f32 %v664, 0.0
        %v697 = vmax.f32 %v667, 0.0
        %v698 = vmax.f32 %v669, 0.0
        %v699 = vmax.f32 %v672, 0.0
        %v700 = vmax.f32 %v674, 0.0
        %v701 = vmax.f32 %v677, 0.0
        %v702 = vmax.f32 %v679, 0.0
        %v703 = vmax.f32 %v682, 0.0
        %v704 = vmax.f32 %v684, 0.0
        %v705 = vmax.f32 %v687, 0.0
        %v706 = vmax.f32 %v689, 0.0
        %v707 = vpack.c.bf16 %v692, %v691
        %v708 = vpack.c.bf16 %v694, %v693
        %v709 = vpack.c.bf16 %v696, %v695
        %v710 = vpack.c.bf16 %v698, %v697
        %v711 = vpack.c.bf16 %v700, %v699
        %v712 = vpack.c.bf16 %v702, %v701
        %v713 = vpack.c.bf16 %v704, %v703
        %v714 = vpack.c.bf16 %v706, %v705
        %v715 = vld [vmem:[#allocation4] sm:$0xf]
        %v716 = vld [vmem:[#allocation4 + $0x4] sm:$0xf]
        %v717 = vld [vmem:[#allocation4 + $0x8] sm:$0xf]
        %v718 = vld [vmem:[#allocation4 + $0xc] sm:$0xf]
        %v719 = vld [vmem:[#allocation4 + $0x10] sm:$0xf]
        %v720 = vld [vmem:[#allocation4 + $0x14] sm:$0xf]
        %v721 = vld [vmem:[#allocation4 + $0x18] sm:$0xf]
        %v722 = vld [vmem:[#allocation4 + $0x1c] sm:$0xf]
        %v723 = vld [vmem:[#allocation4 + $0x20] sm:$0xf]
        %v724 = vld [vmem:[#allocation4 + $0x24] sm:$0xf]
        %v725 = vld [vmem:[#allocation4 + $0x28] sm:$0xf]
        %v726 = vld [vmem:[#allocation4 + $0x2c] sm:$0xf]
        %v727 = vld [vmem:[#allocation4 + $0x30] sm:$0xf]
        %v728 = vld [vmem:[#allocation4 + $0x34] sm:$0xf]
        %v729 = vld [vmem:[#allocation4 + $0x38] sm:$0xf]
        %v730 = vld [vmem:[#allocation4 + $0x3c] sm:$0xf]
        %v731 = vld [vmem:[#allocation4 + $0x40] sm:$0xf]
        %v732 = vld [vmem:[#allocation4 + $0x44] sm:$0xf]
        %v733 = vld [vmem:[#allocation4 + $0x48] sm:$0xf]
        %v734 = vld [vmem:[#allocation4 + $0x4c] sm:$0xf]
        %v735 = vld [vmem:[#allocation4 + $0x50] sm:$0xf]
        %v736 = vld [vmem:[#allocation4 + $0x54] sm:$0xf]
        %v737 = vld [vmem:[#allocation4 + $0x58] sm:$0xf]
        %v738 = vld [vmem:[#allocation4 + $0x5c] sm:$0xf]
        %v739 = vld [vmem:[#allocation4 + $0x60] sm:$0xf]
        %v740 = vld [vmem:[#allocation4 + $0x64] sm:$0xf]
        %v741 = vld [vmem:[#allocation4 + $0x68] sm:$0xf]
        %v742 = vld [vmem:[#allocation4 + $0x6c] sm:$0xf]
        %v743 = vld [vmem:[#allocation4 + $0x70] sm:$0xf]
        %v744 = vld [vmem:[#allocation4 + $0x74] sm:$0xf]
        %v745 = vld [vmem:[#allocation4 + $0x78] sm:$0xf]
        %v746 = vld [vmem:[#allocation4 + $0x7c] sm:$0xf]
        %v747 = vld [vmem:[#allocation4 + $0x80] sm:$0xf]
        %v748 = vld [vmem:[#allocation4 + $0x84] sm:$0xf]
        %v749 = vld [vmem:[#allocation4 + $0x88] sm:$0xf]
        %v750 = vld [vmem:[#allocation4 + $0x8c] sm:$0xf]
        %v751 = vld [vmem:[#allocation4 + $0x90] sm:$0xf]
        %v752 = vld [vmem:[#allocation4 + $0x94] sm:$0xf]
        %v753 = vld [vmem:[#allocation4 + $0x98] sm:$0xf]
        %v754 = vld [vmem:[#allocation4 + $0x9c] sm:$0xf]
        %v755 = vld [vmem:[#allocation4 + $0xa0] sm:$0xf]
        %v756 = vld [vmem:[#allocation4 + $0xa4] sm:$0xf]
        %v757 = vld [vmem:[#allocation4 + $0xa8] sm:$0xf]
        %v758 = vld [vmem:[#allocation4 + $0xac] sm:$0xf]
        %v759 = vld [vmem:[#allocation4 + $0xb0] sm:$0xf]
        %v760 = vld [vmem:[#allocation4 + $0xb4] sm:$0xf]
        %v761 = vld [vmem:[#allocation4 + $0xb8] sm:$0xf]
        %v762 = vld [vmem:[#allocation4 + $0xbc] sm:$0xf]
        %v763 = vld [vmem:[#allocation4 + $0xc0] sm:$0xf]
        %v764 = vld [vmem:[#allocation4 + $0xc4] sm:$0xf]
        %v765 = vld [vmem:[#allocation4 + $0xc8] sm:$0xf]
        %v766 = vld [vmem:[#allocation4 + $0xcc] sm:$0xf]
        %v767 = vld [vmem:[#allocation4 + $0xd0] sm:$0xf]
        %v768 = vld [vmem:[#allocation4 + $0xd4] sm:$0xf]
        %v769 = vld [vmem:[#allocation4 + $0xd8] sm:$0xf]
        %v770 = vld [vmem:[#allocation4 + $0xdc] sm:$0xf]
        %v771 = vld [vmem:[#allocation4 + $0xe0] sm:$0xf]
        %v772 = vld [vmem:[#allocation4 + $0xe4] sm:$0xf]
        %v773 = vld [vmem:[#allocation4 + $0xe8] sm:$0xf]
        %v774 = vld [vmem:[#allocation4 + $0xec] sm:$0xf]
        %v775 = vld [vmem:[#allocation4 + $0xf0] sm:$0xf]
        %v776 = vld [vmem:[#allocation4 + $0xf4] sm:$0xf]
        %v777 = vld [vmem:[#allocation4 + $0xf8] sm:$0xf]
        %v778 = vld [vmem:[#allocation4 + $0xfc] sm:$0xf]
        %v779 = vld [vmem:[#allocation4 + $0x100] sm:$0xf]
        %v780 = vld [vmem:[#allocation4 + $0x104] sm:$0xf]
        %v781 = vld [vmem:[#allocation4 + $0x108] sm:$0xf]
        %v782 = vld [vmem:[#allocation4 + $0x10c] sm:$0xf]
        %v783 = vld [vmem:[#allocation4 + $0x110] sm:$0xf]
        %v784 = vld [vmem:[#allocation4 + $0x114] sm:$0xf]
        %v785 = vld [vmem:[#allocation4 + $0x118] sm:$0xf]
        %v786 = vld [vmem:[#allocation4 + $0x11c] sm:$0xf]
        %v787 = vld [vmem:[#allocation4 + $0x120] sm:$0xf]
        %v788 = vld [vmem:[#allocation4 + $0x124] sm:$0xf]
        %v789 = vld [vmem:[#allocation4 + $0x128] sm:$0xf]
        %v790 = vld [vmem:[#allocation4 + $0x12c] sm:$0xf]
        %v791 = vld [vmem:[#allocation4 + $0x130] sm:$0xf]
        %v792 = vld [vmem:[#allocation4 + $0x134] sm:$0xf]
        %v793 = vld [vmem:[#allocation4 + $0x138] sm:$0xf]
        %v794 = vld [vmem:[#allocation4 + $0x13c] sm:$0xf]
        %v795 = vld [vmem:[#allocation4 + $0x140] sm:$0xf]
        %v796 = vld [vmem:[#allocation4 + $0x144] sm:$0xf]
        %v797 = vld [vmem:[#allocation4 + $0x148] sm:$0xf]
        %v798 = vld [vmem:[#allocation4 + $0x14c] sm:$0xf]
        %v799 = vld [vmem:[#allocation4 + $0x150] sm:$0xf]
        %v800 = vld [vmem:[#allocation4 + $0x154] sm:$0xf]
        %v801 = vld [vmem:[#allocation4 + $0x158] sm:$0xf]
        %v802 = vld [vmem:[#allocation4 + $0x15c] sm:$0xf]
        %v803 = vld [vmem:[#allocation4 + $0x160] sm:$0xf]
        %v804 = vld [vmem:[#allocation4 + $0x164] sm:$0xf]
        %v805 = vld [vmem:[#allocation4 + $0x168] sm:$0xf]
        %v806 = vld [vmem:[#allocation4 + $0x16c] sm:$0xf]
        %v807 = vld [vmem:[#allocation4 + $0x170] sm:$0xf]
        %v808 = vld [vmem:[#allocation4 + $0x174] sm:$0xf]
        %v809 = vld [vmem:[#allocation4 + $0x178] sm:$0xf]
        %v810 = vld [vmem:[#allocation4 + $0x17c] sm:$0xf]
        %v811 = vld [vmem:[#allocation4 + $0x180] sm:$0xf]
        %v812 = vld [vmem:[#allocation4 + $0x184] sm:$0xf]
        %v813 = vld [vmem:[#allocation4 + $0x188] sm:$0xf]
        %v814 = vld [vmem:[#allocation4 + $0x18c] sm:$0xf]
        %v815 = vld [vmem:[#allocation4 + $0x190] sm:$0xf]
        %v816 = vld [vmem:[#allocation4 + $0x194] sm:$0xf]
        %v817 = vld [vmem:[#allocation4 + $0x198] sm:$0xf]
        %v818 = vld [vmem:[#allocation4 + $0x19c] sm:$0xf]
        %v819 = vld [vmem:[#allocation4 + $0x1a0] sm:$0xf]
        %v820 = vld [vmem:[#allocation4 + $0x1a4] sm:$0xf]
        %v821 = vld [vmem:[#allocation4 + $0x1a8] sm:$0xf]
        %v822 = vld [vmem:[#allocation4 + $0x1ac] sm:$0xf]
        %v823 = vld [vmem:[#allocation4 + $0x1b0] sm:$0xf]
        %v824 = vld [vmem:[#allocation4 + $0x1b4] sm:$0xf]
        %v825 = vld [vmem:[#allocation4 + $0x1b8] sm:$0xf]
        %v826 = vld [vmem:[#allocation4 + $0x1bc] sm:$0xf]
        %v827 = vld [vmem:[#allocation4 + $0x1c0] sm:$0xf]
        %v828 = vld [vmem:[#allocation4 + $0x1c4] sm:$0xf]
        %v829 = vld [vmem:[#allocation4 + $0x1c8] sm:$0xf]
        %v830 = vld [vmem:[#allocation4 + $0x1cc] sm:$0xf]
        %v831 = vld [vmem:[#allocation4 + $0x1d0] sm:$0xf]
        %v832 = vld [vmem:[#allocation4 + $0x1d4] sm:$0xf]
        %v833 = vld [vmem:[#allocation4 + $0x1d8] sm:$0xf]
        %v834 = vld [vmem:[#allocation4 + $0x1dc] sm:$0xf]
        %v835 = vld [vmem:[#allocation4 + $0x1e0] sm:$0xf]
        %v836 = vld [vmem:[#allocation4 + $0x1e4] sm:$0xf]
        %v837 = vld [vmem:[#allocation4 + $0x1e8] sm:$0xf]
        %v838 = vld [vmem:[#allocation4 + $0x1ec] sm:$0xf]
        %v839 = vld [vmem:[#allocation4 + $0x1f0] sm:$0xf]
        %v840 = vld [vmem:[#allocation4 + $0x1f4] sm:$0xf]
        %v841 = vld [vmem:[#allocation4 + $0x1f8] sm:$0xf]
        %v842 = vld [vmem:[#allocation4 + $0x1fc] sm:$0xf]
        %v971 = vunpack.c.l.b16 %v715
        %v972 = vunpack.c.l.b16 %v716
        %v973 = vunpack.c.l.b16 %v717
        %v974 = vunpack.c.l.b16 %v718
        %v975 = vunpack.c.l.b16 %v719
        %v976 = vunpack.c.l.b16 %v720
        %v977 = vunpack.c.l.b16 %v721
        %v978 = vunpack.c.l.b16 %v722
        %v979 = vunpack.c.l.b16 %v723
        %v980 = vunpack.c.l.b16 %v724
        %v981 = vunpack.c.l.b16 %v725
        %v982 = vunpack.c.l.b16 %v726
        %v983 = vunpack.c.l.b16 %v727
        %v984 = vunpack.c.l.b16 %v728
        %v985 = vunpack.c.l.b16 %v729
        %v986 = vunpack.c.l.b16 %v730
        %v987 = vunpack.c.l.b16 %v731
        %v988 = vunpack.c.l.b16 %v732
        %v989 = vunpack.c.l.b16 %v733
        %v990 = vunpack.c.l.b16 %v734
        %v991 = vunpack.c.l.b16 %v735
        %v992 = vunpack.c.l.b16 %v736
        %v993 = vunpack.c.l.b16 %v737
        %v994 = vunpack.c.l.b16 %v738
        %v995 = vunpack.c.l.b16 %v739
        %v996 = vunpack.c.l.b16 %v740
        %v997 = vunpack.c.l.b16 %v741
        %v998 = vunpack.c.l.b16 %v742
        %v999 = vunpack.c.l.b16 %v743
        %v1000 = vunpack.c.l.b16 %v744
        %v1001 = vunpack.c.l.b16 %v745
        %v1002 = vunpack.c.l.b16 %v746
        %v1003 = vunpack.c.l.b16 %v747
        %v1004 = vunpack.c.l.b16 %v748
        %v1005 = vunpack.c.l.b16 %v749
        %v1006 = vunpack.c.l.b16 %v750
        %v1007 = vunpack.c.l.b16 %v751
        %v1008 = vunpack.c.l.b16 %v752
        %v1009 = vunpack.c.l.b16 %v753
        %v1010 = vunpack.c.l.b16 %v754
        %v1011 = vunpack.c.l.b16 %v755
        %v1012 = vunpack.c.l.b16 %v756
        %v1013 = vunpack.c.l.b16 %v757
        %v1014 = vunpack.c.l.b16 %v758
        %v1015 = vunpack.c.l.b16 %v759
        %v1016 = vunpack.c.l.b16 %v760
        %v1017 = vunpack.c.l.b16 %v761
        %v1018 = vunpack.c.l.b16 %v762
        %v1019 = vunpack.c.l.b16 %v763
        %v1020 = vunpack.c.l.b16 %v764
        %v1021 = vunpack.c.l.b16 %v765
        %v1022 = vunpack.c.l.b16 %v766
        %v1023 = vunpack.c.l.b16 %v767
        %v1024 = vunpack.c.l.b16 %v768
        %v1025 = vunpack.c.l.b16 %v769
        %v1026 = vunpack.c.l.b16 %v770
        %v1027 = vunpack.c.l.b16 %v771
        %v1028 = vunpack.c.l.b16 %v772
        %v1029 = vunpack.c.l.b16 %v773
        %v1030 = vunpack.c.l.b16 %v774
        %v1031 = vunpack.c.l.b16 %v775
        %v1032 = vunpack.c.l.b16 %v776
        %v1033 = vunpack.c.l.b16 %v777
        %v1034 = vunpack.c.l.b16 %v778
        %v1035 = vunpack.c.l.b16 %v779
        %v1036 = vunpack.c.l.b16 %v780
        %v1037 = vunpack.c.l.b16 %v781
        %v1038 = vunpack.c.l.b16 %v782
        %v1039 = vunpack.c.l.b16 %v783
        %v1040 = vunpack.c.l.b16 %v784
        %v1041 = vunpack.c.l.b16 %v785
        %v1042 = vunpack.c.l.b16 %v786
        %v1043 = vunpack.c.l.b16 %v787
        %v1044 = vunpack.c.l.b16 %v788
        %v1045 = vunpack.c.l.b16 %v789
        %v1046 = vunpack.c.l.b16 %v790
        %v1047 = vunpack.c.l.b16 %v791
        %v1048 = vunpack.c.l.b16 %v792
        %v1049 = vunpack.c.l.b16 %v793
        %v1050 = vunpack.c.l.b16 %v794
        %v1051 = vunpack.c.l.b16 %v795
        %v1052 = vunpack.c.l.b16 %v796
        %v1053 = vunpack.c.l.b16 %v797
        %v1054 = vunpack.c.l.b16 %v798
        %v1055 = vunpack.c.l.b16 %v799
        %v1056 = vunpack.c.l.b16 %v800
        %v1057 = vunpack.c.l.b16 %v801
        %v1058 = vunpack.c.l.b16 %v802
        %v1059 = vunpack.c.l.b16 %v803
        %v1060 = vunpack.c.l.b16 %v804
        %v1061 = vunpack.c.l.b16 %v805
        %v1062 = vunpack.c.l.b16 %v806
        %v1063 = vunpack.c.l.b16 %v807
        %v1064 = vunpack.c.l.b16 %v808
        %v1065 = vunpack.c.l.b16 %v809
        %v1066 = vunpack.c.l.b16 %v810
        %v1067 = vunpack.c.l.b16 %v811
        %v1068 = vunpack.c.l.b16 %v812
        %v1069 = vunpack.c.l.b16 %v813
        %v1070 = vunpack.c.l.b16 %v814
        %v1071 = vunpack.c.l.b16 %v815
        %v1072 = vunpack.c.l.b16 %v816
        %v1073 = vunpack.c.l.b16 %v817
        %v1074 = vunpack.c.l.b16 %v818
        %v1075 = vunpack.c.l.b16 %v819
        %v1076 = vunpack.c.l.b16 %v820
        %v1077 = vunpack.c.l.b16 %v821
        %v1078 = vunpack.c.l.b16 %v822
        %v1079 = vunpack.c.l.b16 %v823
        %v1080 = vunpack.c.l.b16 %v824
        %v1081 = vunpack.c.l.b16 %v825
        %v1082 = vunpack.c.l.b16 %v826
        %v1083 = vunpack.c.l.b16 %v827
        %v1084 = vunpack.c.l.b16 %v828
        %v1085 = vunpack.c.l.b16 %v829
        %v1086 = vunpack.c.l.b16 %v830
        %v1087 = vunpack.c.l.b16 %v831
        %v1088 = vunpack.c.l.b16 %v832
        %v1089 = vunpack.c.l.b16 %v833
        %v1090 = vunpack.c.l.b16 %v834
        %v1091 = vunpack.c.l.b16 %v835
        %v1092 = vunpack.c.l.b16 %v836
        %v1093 = vunpack.c.l.b16 %v837
        %v1094 = vunpack.c.l.b16 %v838
        %v1095 = vunpack.c.l.b16 %v839
        %v1096 = vunpack.c.l.b16 %v840
        %v1097 = vunpack.c.l.b16 %v841
        %v1098 = vunpack.c.l.b16 %v842
        %v1099 = vpack.c.b16 %v972, %v971
        %v1100 = vpack.c.b16 %v974, %v973
        %v1101 = vpack.c.b16 %v976, %v975
        %v1102 = vpack.c.b16 %v978, %v977
        %v1103 = vpack.c.b16 %v980, %v979
        %v1104 = vpack.c.b16 %v982, %v981
        %v1105 = vpack.c.b16 %v984, %v983
        %v1106 = vpack.c.b16 %v986, %v985
        %v1107 = vpack.c.b16 %v988, %v987
        %v1108 = vpack.c.b16 %v990, %v989
        %v1109 = vpack.c.b16 %v992, %v991
        %v1110 = vpack.c.b16 %v994, %v993
        %v1111 = vpack.c.b16 %v996, %v995
        %v1112 = vpack.c.b16 %v998, %v997
        %v1113 = vpack.c.b16 %v1000, %v999
        %v1114 = vpack.c.b16 %v1002, %v1001
        %v1115 = vpack.c.b16 %v1004, %v1003
        %v1116 = vpack.c.b16 %v1006, %v1005
        %v1117 = vpack.c.b16 %v1008, %v1007
        %v1118 = vpack.c.b16 %v1010, %v1009
        %v1119 = vpack.c.b16 %v1012, %v1011
        %v1120 = vpack.c.b16 %v1014, %v1013
        %v1121 = vpack.c.b16 %v1016, %v1015
        %v1122 = vpack.c.b16 %v1018, %v1017
        %v1123 = vpack.c.b16 %v1020, %v1019
        %v1124 = vpack.c.b16 %v1022, %v1021
        %v1125 = vpack.c.b16 %v1024, %v1023
        %v1126 = vpack.c.b16 %v1026, %v1025
        %v1127 = vpack.c.b16 %v1028, %v1027
        %v1128 = vpack.c.b16 %v1030, %v1029
        %v1129 = vpack.c.b16 %v1032, %v1031
        %v1130 = vpack.c.b16 %v1034, %v1033
        %v1131 = vpack.c.b16 %v1036, %v1035
        %v1132 = vpack.c.b16 %v1038, %v1037
        %v1133 = vpack.c.b16 %v1040, %v1039
        %v1134 = vpack.c.b16 %v1042, %v1041
        %v1135 = vpack.c.b16 %v1044, %v1043
        %v1136 = vpack.c.b16 %v1046, %v1045
        %v1137 = vpack.c.b16 %v1048, %v1047
        %v1138 = vpack.c.b16 %v1050, %v1049
        %v1139 = vpack.c.b16 %v1052, %v1051
        %v1140 = vpack.c.b16 %v1054, %v1053
        %v1141 = vpack.c.b16 %v1056, %v1055
        %v1142 = vpack.c.b16 %v1058, %v1057
        %v1143 = vpack.c.b16 %v1060, %v1059
        %v1144 = vpack.c.b16 %v1062, %v1061
        %v1145 = vpack.c.b16 %v1064, %v1063
        %v1146 = vpack.c.b16 %v1066, %v1065
        %v1147 = vpack.c.b16 %v1068, %v1067
        %v1148 = vpack.c.b16 %v1070, %v1069
        %v1149 = vpack.c.b16 %v1072, %v1071
        %v1150 = vpack.c.b16 %v1074, %v1073
        %v1151 = vpack.c.b16 %v1076, %v1075
        %v1152 = vpack.c.b16 %v1078, %v1077
        %v1153 = vpack.c.b16 %v1080, %v1079
        %v1154 = vpack.c.b16 %v1082, %v1081
        %v1155 = vpack.c.b16 %v1084, %v1083
        %v1156 = vpack.c.b16 %v1086, %v1085
        %v1157 = vpack.c.b16 %v1088, %v1087
        %v1158 = vpack.c.b16 %v1090, %v1089
        %v1159 = vpack.c.b16 %v1092, %v1091
        %v1160 = vpack.c.b16 %v1094, %v1093
        %v1161 = vpack.c.b16 %v1096, %v1095
        %v1162 = vpack.c.b16 %v1098, %v1097
        %1227 = vmatpush.bf16.msra.mxu0 %v714
        %1228 = vmatpush.bf16.msra.mxu0 %v713
        %1229 = vmatpush.bf16.msra.mxu0 %v712
        %1230 = vmatpush.bf16.msra.mxu0 %v711
        %1231 = vmatpush.bf16.msra.mxu0 %v710
        %1232 = vmatpush.bf16.msra.mxu0 %v709
        %1233 = vmatpush.bf16.msra.mxu0 %v708
        %1234 = vmatpush.bf16.msra.mxu0 %v707
        %1235 = vmatmul.bf16.gmra.mxu0 %v1099
        %v1236 = vpop.f32.mrf.mxu0
        %v1237 = vadd.f32 0.0, %v1236
        %v1238 = vpop.f32.mrf.mxu0
        %v1239 = vadd.f32 0.0, %v1238
        %1240 = vmatmul.bf16.gmra.mxu0 %v1100
        %v1241 = vpop.f32.mrf.mxu0
        %v1242 = vadd.f32 0.0, %v1241
        %v1243 = vpop.f32.mrf.mxu0
        %v1244 = vadd.f32 0.0, %v1243
        %1245 = vmatmul.bf16.gmra.mxu0 %v1101
        %v1246 = vpop.f32.mrf.mxu0
        %v1247 = vadd.f32 0.0, %v1246
        %v1248 = vpop.f32.mrf.mxu0
        %v1249 = vadd.f32 0.0, %v1248
        %1250 = vmatmul.bf16.gmra.mxu0 %v1102
        %v1251 = vpop.f32.mrf.mxu0
        %v1252 = vadd.f32 0.0, %v1251
        %v1253 = vpop.f32.mrf.mxu0
        %v1254 = vadd.f32 0.0, %v1253
        %1255 = vmatmul.bf16.gmra.mxu0 %v1103
        %v1256 = vpop.f32.mrf.mxu0
        %v1257 = vadd.f32 0.0, %v1256
        %v1258 = vpop.f32.mrf.mxu0
        %v1259 = vadd.f32 0.0, %v1258
        %1260 = vmatmul.bf16.gmra.mxu0 %v1104
        %v1261 = vpop.f32.mrf.mxu0
        %v1262 = vadd.f32 0.0, %v1261
        %v1263 = vpop.f32.mrf.mxu0
        %v1264 = vadd.f32 0.0, %v1263
        %1265 = vmatmul.bf16.gmra.mxu0 %v1105
        %v1266 = vpop.f32.mrf.mxu0
        %v1267 = vadd.f32 0.0, %v1266
        %v1268 = vpop.f32.mrf.mxu0
        %v1269 = vadd.f32 0.0, %v1268
        %1270 = vmatmul.bf16.gmra.mxu0 %v1106
        %v1271 = vpop.f32.mrf.mxu0
        %v1272 = vadd.f32 0.0, %v1271
        %v1273 = vpop.f32.mrf.mxu0
        %v1274 = vadd.f32 0.0, %v1273
        %1275 = vmatmul.bf16.gmra.mxu0 %v1107
        %v1276 = vpop.f32.mrf.mxu0
        %v1277 = vadd.f32 0.0, %v1276
        %v1278 = vpop.f32.mrf.mxu0
        %v1279 = vadd.f32 0.0, %v1278
        %1280 = vmatmul.bf16.gmra.mxu0 %v1108
        %v1281 = vpop.f32.mrf.mxu0
        %v1282 = vadd.f32 0.0, %v1281
        %v1283 = vpop.f32.mrf.mxu0
        %v1284 = vadd.f32 0.0, %v1283
        %1285 = vmatmul.bf16.gmra.mxu0 %v1109
        %v1286 = vpop.f32.mrf.mxu0
        %v1287 = vadd.f32 0.0, %v1286
        %v1288 = vpop.f32.mrf.mxu0
        %v1289 = vadd.f32 0.0, %v1288
        %1290 = vmatmul.bf16.gmra.mxu0 %v1110
        %v1291 = vpop.f32.mrf.mxu0
        %v1292 = vadd.f32 0.0, %v1291
        %v1293 = vpop.f32.mrf.mxu0
        %v1294 = vadd.f32 0.0, %v1293
        %1295 = vmatmul.bf16.gmra.mxu0 %v1111
        %v1296 = vpop.f32.mrf.mxu0
        %v1297 = vadd.f32 0.0, %v1296
        %v1298 = vpop.f32.mrf.mxu0
        %v1299 = vadd.f32 0.0, %v1298
        %1300 = vmatmul.bf16.gmra.mxu0 %v1112
        %v1301 = vpop.f32.mrf.mxu0
        %v1302 = vadd.f32 0.0, %v1301
        %v1303 = vpop.f32.mrf.mxu0
        %v1304 = vadd.f32 0.0, %v1303
        %1305 = vmatmul.bf16.gmra.mxu0 %v1113
        %v1306 = vpop.f32.mrf.mxu0
        %v1307 = vadd.f32 0.0, %v1306
        %v1308 = vpop.f32.mrf.mxu0
        %v1309 = vadd.f32 0.0, %v1308
        %1310 = vmatmul.bf16.gmra.mxu0 %v1114
        %v1311 = vpop.f32.mrf.mxu0
        %v1312 = vadd.f32 0.0, %v1311
        %v1313 = vpop.f32.mrf.mxu0
        %v1314 = vadd.f32 0.0, %v1313
        %1315 = vmatmul.bf16.gmra.mxu0 %v1115
        %v1316 = vpop.f32.mrf.mxu0
        %v1317 = vadd.f32 0.0, %v1316
        %v1318 = vpop.f32.mrf.mxu0
        %v1319 = vadd.f32 0.0, %v1318
        %1320 = vmatmul.bf16.gmra.mxu0 %v1116
        %v1321 = vpop.f32.mrf.mxu0
        %v1322 = vadd.f32 0.0, %v1321
        %v1323 = vpop.f32.mrf.mxu0
        %v1324 = vadd.f32 0.0, %v1323
        %1325 = vmatmul.bf16.gmra.mxu0 %v1117
        %v1326 = vpop.f32.mrf.mxu0
        %v1327 = vadd.f32 0.0, %v1326
        %v1328 = vpop.f32.mrf.mxu0
        %v1329 = vadd.f32 0.0, %v1328
        %1330 = vmatmul.bf16.gmra.mxu0 %v1118
        %v1331 = vpop.f32.mrf.mxu0
        %v1332 = vadd.f32 0.0, %v1331
        %v1333 = vpop.f32.mrf.mxu0
        %v1334 = vadd.f32 0.0, %v1333
        %1335 = vmatmul.bf16.gmra.mxu0 %v1119
        %v1336 = vpop.f32.mrf.mxu0
        %v1337 = vadd.f32 0.0, %v1336
        %v1338 = vpop.f32.mrf.mxu0
        %v1339 = vadd.f32 0.0, %v1338
        %1340 = vmatmul.bf16.gmra.mxu0 %v1120
        %v1341 = vpop.f32.mrf.mxu0
        %v1342 = vadd.f32 0.0, %v1341
        %v1343 = vpop.f32.mrf.mxu0
        %v1344 = vadd.f32 0.0, %v1343
        %1345 = vmatmul.bf16.gmra.mxu0 %v1121
        %v1346 = vpop.f32.mrf.mxu0
        %v1347 = vadd.f32 0.0, %v1346
        %v1348 = vpop.f32.mrf.mxu0
        %v1349 = vadd.f32 0.0, %v1348
        %1350 = vmatmul.bf16.gmra.mxu0 %v1122
        %v1351 = vpop.f32.mrf.mxu0
        %v1352 = vadd.f32 0.0, %v1351
        %v1353 = vpop.f32.mrf.mxu0
        %v1354 = vadd.f32 0.0, %v1353
        %1355 = vmatmul.bf16.gmra.mxu0 %v1123
        %v1356 = vpop.f32.mrf.mxu0
        %v1357 = vadd.f32 0.0, %v1356
        %v1358 = vpop.f32.mrf.mxu0
        %v1359 = vadd.f32 0.0, %v1358
        %1360 = vmatmul.bf16.gmra.mxu0 %v1124
        %v1361 = vpop.f32.mrf.mxu0
        %v1362 = vadd.f32 0.0, %v1361
        %v1363 = vpop.f32.mrf.mxu0
        %v1364 = vadd.f32 0.0, %v1363
        %1365 = vmatmul.bf16.gmra.mxu0 %v1125
        %v1366 = vpop.f32.mrf.mxu0
        %v1367 = vadd.f32 0.0, %v1366
        %v1368 = vpop.f32.mrf.mxu0
        %v1369 = vadd.f32 0.0, %v1368
        %1370 = vmatmul.bf16.gmra.mxu0 %v1126
        %v1371 = vpop.f32.mrf.mxu0
        %v1372 = vadd.f32 0.0, %v1371
        %v1373 = vpop.f32.mrf.mxu0
        %v1374 = vadd.f32 0.0, %v1373
        %1375 = vmatmul.bf16.gmra.mxu0 %v1127
        %v1376 = vpop.f32.mrf.mxu0
        %v1377 = vadd.f32 0.0, %v1376
        %v1378 = vpop.f32.mrf.mxu0
        %v1379 = vadd.f32 0.0, %v1378
        %1380 = vmatmul.bf16.gmra.mxu0 %v1128
        %v1381 = vpop.f32.mrf.mxu0
        %v1382 = vadd.f32 0.0, %v1381
        %v1383 = vpop.f32.mrf.mxu0
        %v1384 = vadd.f32 0.0, %v1383
        %1385 = vmatmul.bf16.gmra.mxu0 %v1129
        %v1386 = vpop.f32.mrf.mxu0
        %v1387 = vadd.f32 0.0, %v1386
        %v1388 = vpop.f32.mrf.mxu0
        %v1389 = vadd.f32 0.0, %v1388
        %1390 = vmatmul.bf16.gmra.mxu0 %v1130
        %v1391 = vpop.f32.mrf.mxu0
        %v1392 = vadd.f32 0.0, %v1391
        %v1393 = vpop.f32.mrf.mxu0
        %v1394 = vadd.f32 0.0, %v1393
        %1395 = vmatmul.bf16.gmra.mxu0 %v1131
        %v1396 = vpop.f32.mrf.mxu0
        %v1397 = vadd.f32 0.0, %v1396
        %v1398 = vpop.f32.mrf.mxu0
        %v1399 = vadd.f32 0.0, %v1398
        %1400 = vmatmul.bf16.gmra.mxu0 %v1132
        %v1401 = vpop.f32.mrf.mxu0
        %v1402 = vadd.f32 0.0, %v1401
        %v1403 = vpop.f32.mrf.mxu0
        %v1404 = vadd.f32 0.0, %v1403
        %1405 = vmatmul.bf16.gmra.mxu0 %v1133
        %v1406 = vpop.f32.mrf.mxu0
        %v1407 = vadd.f32 0.0, %v1406
        %v1408 = vpop.f32.mrf.mxu0
        %v1409 = vadd.f32 0.0, %v1408
        %1410 = vmatmul.bf16.gmra.mxu0 %v1134
        %v1411 = vpop.f32.mrf.mxu0
        %v1412 = vadd.f32 0.0, %v1411
        %v1413 = vpop.f32.mrf.mxu0
        %v1414 = vadd.f32 0.0, %v1413
        %1415 = vmatmul.bf16.gmra.mxu0 %v1135
        %v1416 = vpop.f32.mrf.mxu0
        %v1417 = vadd.f32 0.0, %v1416
        %v1418 = vpop.f32.mrf.mxu0
        %v1419 = vadd.f32 0.0, %v1418
        %1420 = vmatmul.bf16.gmra.mxu0 %v1136
        %v1421 = vpop.f32.mrf.mxu0
        %v1422 = vadd.f32 0.0, %v1421
        %v1423 = vpop.f32.mrf.mxu0
        %v1424 = vadd.f32 0.0, %v1423
        %1425 = vmatmul.bf16.gmra.mxu0 %v1137
        %v1426 = vpop.f32.mrf.mxu0
        %v1427 = vadd.f32 0.0, %v1426
        %v1428 = vpop.f32.mrf.mxu0
        %v1429 = vadd.f32 0.0, %v1428
        %1430 = vmatmul.bf16.gmra.mxu0 %v1138
        %v1431 = vpop.f32.mrf.mxu0
        %v1432 = vadd.f32 0.0, %v1431
        %v1433 = vpop.f32.mrf.mxu0
        %v1434 = vadd.f32 0.0, %v1433
        %1435 = vmatmul.bf16.gmra.mxu0 %v1139
        %v1436 = vpop.f32.mrf.mxu0
        %v1437 = vadd.f32 0.0, %v1436
        %v1438 = vpop.f32.mrf.mxu0
        %v1439 = vadd.f32 0.0, %v1438
        %1440 = vmatmul.bf16.gmra.mxu0 %v1140
        %v1441 = vpop.f32.mrf.mxu0
        %v1442 = vadd.f32 0.0, %v1441
        %v1443 = vpop.f32.mrf.mxu0
        %v1444 = vadd.f32 0.0, %v1443
        %1445 = vmatmul.bf16.gmra.mxu0 %v1141
        %v1446 = vpop.f32.mrf.mxu0
        %v1447 = vadd.f32 0.0, %v1446
        %v1448 = vpop.f32.mrf.mxu0
        %v1449 = vadd.f32 0.0, %v1448
        %1450 = vmatmul.bf16.gmra.mxu0 %v1142
        %v1451 = vpop.f32.mrf.mxu0
        %v1452 = vadd.f32 0.0, %v1451
        %v1453 = vpop.f32.mrf.mxu0
        %v1454 = vadd.f32 0.0, %v1453
        %1455 = vmatmul.bf16.gmra.mxu0 %v1143
        %v1456 = vpop.f32.mrf.mxu0
        %v1457 = vadd.f32 0.0, %v1456
        %v1458 = vpop.f32.mrf.mxu0
        %v1459 = vadd.f32 0.0, %v1458
        %1460 = vmatmul.bf16.gmra.mxu0 %v1144
        %v1461 = vpop.f32.mrf.mxu0
        %v1462 = vadd.f32 0.0, %v1461
        %v1463 = vpop.f32.mrf.mxu0
        %v1464 = vadd.f32 0.0, %v1463
        %1465 = vmatmul.bf16.gmra.mxu0 %v1145
        %v1466 = vpop.f32.mrf.mxu0
        %v1467 = vadd.f32 0.0, %v1466
        %v1468 = vpop.f32.mrf.mxu0
        %v1469 = vadd.f32 0.0, %v1468
        %1470 = vmatmul.bf16.gmra.mxu0 %v1146
        %v1471 = vpop.f32.mrf.mxu0
        %v1472 = vadd.f32 0.0, %v1471
        %v1473 = vpop.f32.mrf.mxu0
        %v1474 = vadd.f32 0.0, %v1473
        %1475 = vmatmul.bf16.gmra.mxu0 %v1147
        %v1476 = vpop.f32.mrf.mxu0
        %v1477 = vadd.f32 0.0, %v1476
        %v1478 = vpop.f32.mrf.mxu0
        %v1479 = vadd.f32 0.0, %v1478
        %1480 = vmatmul.bf16.gmra.mxu0 %v1148
        %v1481 = vpop.f32.mrf.mxu0
        %v1482 = vadd.f32 0.0, %v1481
        %v1483 = vpop.f32.mrf.mxu0
        %v1484 = vadd.f32 0.0, %v1483
        %1485 = vmatmul.bf16.gmra.mxu0 %v1149
        %v1486 = vpop.f32.mrf.mxu0
        %v1487 = vadd.f32 0.0, %v1486
        %v1488 = vpop.f32.mrf.mxu0
        %v1489 = vadd.f32 0.0, %v1488
        %1490 = vmatmul.bf16.gmra.mxu0 %v1150
        %v1491 = vpop.f32.mrf.mxu0
        %v1492 = vadd.f32 0.0, %v1491
        %v1493 = vpop.f32.mrf.mxu0
        %v1494 = vadd.f32 0.0, %v1493
        %1495 = vmatmul.bf16.gmra.mxu0 %v1151
        %v1496 = vpop.f32.mrf.mxu0
        %v1497 = vadd.f32 0.0, %v1496
        %v1498 = vpop.f32.mrf.mxu0
        %v1499 = vadd.f32 0.0, %v1498
        %1500 = vmatmul.bf16.gmra.mxu0 %v1152
        %v1501 = vpop.f32.mrf.mxu0
        %v1502 = vadd.f32 0.0, %v1501
        %v1503 = vpop.f32.mrf.mxu0
        %v1504 = vadd.f32 0.0, %v1503
        %1505 = vmatmul.bf16.gmra.mxu0 %v1153
        %v1506 = vpop.f32.mrf.mxu0
        %v1507 = vadd.f32 0.0, %v1506
        %v1508 = vpop.f32.mrf.mxu0
        %v1509 = vadd.f32 0.0, %v1508
        %1510 = vmatmul.bf16.gmra.mxu0 %v1154
        %v1511 = vpop.f32.mrf.mxu0
        %v1512 = vadd.f32 0.0, %v1511
        %v1513 = vpop.f32.mrf.mxu0
        %v1514 = vadd.f32 0.0, %v1513
        %1515 = vmatmul.bf16.gmra.mxu0 %v1155
        %v1516 = vpop.f32.mrf.mxu0
        %v1517 = vadd.f32 0.0, %v1516
        %v1518 = vpop.f32.mrf.mxu0
        %v1519 = vadd.f32 0.0, %v1518
        %1520 = vmatmul.bf16.gmra.mxu0 %v1156
        %v1521 = vpop.f32.mrf.mxu0
        %v1522 = vadd.f32 0.0, %v1521
        %v1523 = vpop.f32.mrf.mxu0
        %v1524 = vadd.f32 0.0, %v1523
        %1525 = vmatmul.bf16.gmra.mxu0 %v1157
        %v1526 = vpop.f32.mrf.mxu0
        %v1527 = vadd.f32 0.0, %v1526
        %v1528 = vpop.f32.mrf.mxu0
        %v1529 = vadd.f32 0.0, %v1528
        %1530 = vmatmul.bf16.gmra.mxu0 %v1158
        %v1531 = vpop.f32.mrf.mxu0
        %v1532 = vadd.f32 0.0, %v1531
        %v1533 = vpop.f32.mrf.mxu0
        %v1534 = vadd.f32 0.0, %v1533
        %1535 = vmatmul.bf16.gmra.mxu0 %v1159
        %v1536 = vpop.f32.mrf.mxu0
        %v1537 = vadd.f32 0.0, %v1536
        %v1538 = vpop.f32.mrf.mxu0
        %v1539 = vadd.f32 0.0, %v1538
        %1540 = vmatmul.bf16.gmra.mxu0 %v1160
        %v1541 = vpop.f32.mrf.mxu0
        %v1542 = vadd.f32 0.0, %v1541
        %v1543 = vpop.f32.mrf.mxu0
        %v1544 = vadd.f32 0.0, %v1543
        %1545 = vmatmul.bf16.gmra.mxu0 %v1161
        %v1546 = vpop.f32.mrf.mxu0
        %v1547 = vadd.f32 0.0, %v1546
        %v1548 = vpop.f32.mrf.mxu0
        %v1549 = vadd.f32 0.0, %v1548
        %1550 = vmatmul.bf16.gmra.mxu0 %v1162
        %v1551 = vpop.f32.mrf.mxu0
        %v1552 = vadd.f32 0.0, %v1551
        %v1553 = vpop.f32.mrf.mxu0
        %v1554 = vadd.f32 0.0, %v1553
        %1555 = vdwg.mxu0
        %1556 = vmax.xlane.f32.xlu0 %v1237
        %v1557 = vpop.xlane.xlu0 %1556
        %1558 = vmax.xlane.f32.xlu0 %v1239
        %v1559 = vpop.xlane.xlu0 %1558
        %1560 = vmax.xlane.f32.xlu0 %v1242
        %v1561 = vpop.xlane.xlu0 %1560
        %1562 = vmax.xlane.f32.xlu0 %v1244
        %v1563 = vpop.xlane.xlu0 %1562
        %1564 = vmax.xlane.f32.xlu0 %v1247
        %v1565 = vpop.xlane.xlu0 %1564
        %1566 = vmax.xlane.f32.xlu0 %v1249
        %v1567 = vpop.xlane.xlu0 %1566
        %1568 = vmax.xlane.f32.xlu0 %v1252
        %v1569 = vpop.xlane.xlu0 %1568
        %1570 = vmax.xlane.f32.xlu0 %v1254
        %v1571 = vpop.xlane.xlu0 %1570
        %1572 = vmax.xlane.f32.xlu0 %v1257
        %v1573 = vpop.xlane.xlu0 %1572
        %1574 = vmax.xlane.f32.xlu0 %v1259
        %v1575 = vpop.xlane.xlu0 %1574
        %1576 = vmax.xlane.f32.xlu0 %v1262
        %v1577 = vpop.xlane.xlu0 %1576
        %1578 = vmax.xlane.f32.xlu0 %v1264
        %v1579 = vpop.xlane.xlu0 %1578
        %1580 = vmax.xlane.f32.xlu0 %v1267
        %v1581 = vpop.xlane.xlu0 %1580
        %1582 = vmax.xlane.f32.xlu0 %v1269
        %v1583 = vpop.xlane.xlu0 %1582
        %1584 = vmax.xlane.f32.xlu0 %v1272
        %v1585 = vpop.xlane.xlu0 %1584
        %1586 = vmax.xlane.f32.xlu0 %v1274
        %v1587 = vpop.xlane.xlu0 %1586
        %1588 = vmax.xlane.f32.xlu0 %v1277
        %v1589 = vpop.xlane.xlu0 %1588
        %1590 = vmax.xlane.f32.xlu0 %v1279
        %v1591 = vpop.xlane.xlu0 %1590
        %1592 = vmax.xlane.f32.xlu0 %v1282
        %v1593 = vpop.xlane.xlu0 %1592
        %1594 = vmax.xlane.f32.xlu0 %v1284
        %v1595 = vpop.xlane.xlu0 %1594
        %1596 = vmax.xlane.f32.xlu0 %v1287
        %v1597 = vpop.xlane.xlu0 %1596
        %1598 = vmax.xlane.f32.xlu0 %v1289
        %v1599 = vpop.xlane.xlu0 %1598
        %1600 = vmax.xlane.f32.xlu0 %v1292
        %v1601 = vpop.xlane.xlu0 %1600
        %1602 = vmax.xlane.f32.xlu0 %v1294
        %v1603 = vpop.xlane.xlu0 %1602
        %1604 = vmax.xlane.f32.xlu0 %v1297
        %v1605 = vpop.xlane.xlu0 %1604
        %1606 = vmax.xlane.f32.xlu0 %v1299
        %v1607 = vpop.xlane.xlu0 %1606
        %1608 = vmax.xlane.f32.xlu0 %v1302
        %v1609 = vpop.xlane.xlu0 %1608
        %1610 = vmax.xlane.f32.xlu0 %v1304
        %v1611 = vpop.xlane.xlu0 %1610
        %1612 = vmax.xlane.f32.xlu0 %v1307
        %v1613 = vpop.xlane.xlu0 %1612
        %1614 = vmax.xlane.f32.xlu0 %v1309
        %v1615 = vpop.xlane.xlu0 %1614
        %1616 = vmax.xlane.f32.xlu0 %v1312
        %v1617 = vpop.xlane.xlu0 %1616
        %1618 = vmax.xlane.f32.xlu0 %v1314
        %v1619 = vpop.xlane.xlu0 %1618
        %1620 = vmax.xlane.f32.xlu0 %v1317
        %v1621 = vpop.xlane.xlu0 %1620
        %1622 = vmax.xlane.f32.xlu0 %v1319
        %v1623 = vpop.xlane.xlu0 %1622
        %1624 = vmax.xlane.f32.xlu0 %v1322
        %v1625 = vpop.xlane.xlu0 %1624
        %1626 = vmax.xlane.f32.xlu0 %v1324
        %v1627 = vpop.xlane.xlu0 %1626
        %1628 = vmax.xlane.f32.xlu0 %v1327
        %v1629 = vpop.xlane.xlu0 %1628
        %1630 = vmax.xlane.f32.xlu0 %v1329
        %v1631 = vpop.xlane.xlu0 %1630
        %1632 = vmax.xlane.f32.xlu0 %v1332
        %v1633 = vpop.xlane.xlu0 %1632
        %1634 = vmax.xlane.f32.xlu0 %v1334
        %v1635 = vpop.xlane.xlu0 %1634
        %1636 = vmax.xlane.f32.xlu0 %v1337
        %v1637 = vpop.xlane.xlu0 %1636
        %1638 = vmax.xlane.f32.xlu0 %v1339
        %v1639 = vpop.xlane.xlu0 %1638
        %1640 = vmax.xlane.f32.xlu0 %v1342
        %v1641 = vpop.xlane.xlu0 %1640
        %1642 = vmax.xlane.f32.xlu0 %v1344
        %v1643 = vpop.xlane.xlu0 %1642
        %1644 = vmax.xlane.f32.xlu0 %v1347
        %v1645 = vpop.xlane.xlu0 %1644
        %1646 = vmax.xlane.f32.xlu0 %v1349
        %v1647 = vpop.xlane.xlu0 %1646
        %1648 = vmax.xlane.f32.xlu0 %v1352
        %v1649 = vpop.xlane.xlu0 %1648
        %1650 = vmax.xlane.f32.xlu0 %v1354
        %v1651 = vpop.xlane.xlu0 %1650
        %1652 = vmax.xlane.f32.xlu0 %v1357
        %v1653 = vpop.xlane.xlu0 %1652
        %1654 = vmax.xlane.f32.xlu0 %v1359
        %v1655 = vpop.xlane.xlu0 %1654
        %1656 = vmax.xlane.f32.xlu0 %v1362
        %v1657 = vpop.xlane.xlu0 %1656
        %1658 = vmax.xlane.f32.xlu0 %v1364
        %v1659 = vpop.xlane.xlu0 %1658
        %1660 = vmax.xlane.f32.xlu0 %v1367
        %v1661 = vpop.xlane.xlu0 %1660
        %1662 = vmax.xlane.f32.xlu0 %v1369
        %v1663 = vpop.xlane.xlu0 %1662
        %1664 = vmax.xlane.f32.xlu0 %v1372
        %v1665 = vpop.xlane.xlu0 %1664
        %1666 = vmax.xlane.f32.xlu0 %v1374
        %v1667 = vpop.xlane.xlu0 %1666
        %1668 = vmax.xlane.f32.xlu0 %v1377
        %v1669 = vpop.xlane.xlu0 %1668
        %1670 = vmax.xlane.f32.xlu0 %v1379
        %v1671 = vpop.xlane.xlu0 %1670
        %1672 = vmax.xlane.f32.xlu0 %v1382
        %v1673 = vpop.xlane.xlu0 %1672
        %1674 = vmax.xlane.f32.xlu0 %v1384
        %v1675 = vpop.xlane.xlu0 %1674
        %1676 = vmax.xlane.f32.xlu0 %v1387
        %v1677 = vpop.xlane.xlu0 %1676
        %1678 = vmax.xlane.f32.xlu0 %v1389
        %v1679 = vpop.xlane.xlu0 %1678
        %1680 = vmax.xlane.f32.xlu0 %v1392
        %v1681 = vpop.xlane.xlu0 %1680
        %1682 = vmax.xlane.f32.xlu0 %v1394
        %v1683 = vpop.xlane.xlu0 %1682
        %1684 = vmax.xlane.f32.xlu0 %v1397
        %v1685 = vpop.xlane.xlu0 %1684
        %1686 = vmax.xlane.f32.xlu0 %v1399
        %v1687 = vpop.xlane.xlu0 %1686
        %1688 = vmax.xlane.f32.xlu0 %v1402
        %v1689 = vpop.xlane.xlu0 %1688
        %1690 = vmax.xlane.f32.xlu0 %v1404
        %v1691 = vpop.xlane.xlu0 %1690
        %1692 = vmax.xlane.f32.xlu0 %v1407
        %v1693 = vpop.xlane.xlu0 %1692
        %1694 = vmax.xlane.f32.xlu0 %v1409
        %v1695 = vpop.xlane.xlu0 %1694
        %1696 = vmax.xlane.f32.xlu0 %v1412
        %v1697 = vpop.xlane.xlu0 %1696
        %1698 = vmax.xlane.f32.xlu0 %v1414
        %v1699 = vpop.xlane.xlu0 %1698
        %1700 = vmax.xlane.f32.xlu0 %v1417
        %v1701 = vpop.xlane.xlu0 %1700
        %1702 = vmax.xlane.f32.xlu0 %v1419
        %v1703 = vpop.xlane.xlu0 %1702
        %1704 = vmax.xlane.f32.xlu0 %v1422
        %v1705 = vpop.xlane.xlu0 %1704
        %1706 = vmax.xlane.f32.xlu0 %v1424
        %v1707 = vpop.xlane.xlu0 %1706
        %1708 = vmax.xlane.f32.xlu0 %v1427
        %v1709 = vpop.xlane.xlu0 %1708
        %1710 = vmax.xlane.f32.xlu0 %v1429
        %v1711 = vpop.xlane.xlu0 %1710
        %1712 = vmax.xlane.f32.xlu0 %v1432
        %v1713 = vpop.xlane.xlu0 %1712
        %1714 = vmax.xlane.f32.xlu0 %v1434
        %v1715 = vpop.xlane.xlu0 %1714
        %1716 = vmax.xlane.f32.xlu0 %v1437
        %v1717 = vpop.xlane.xlu0 %1716
        %1718 = vmax.xlane.f32.xlu0 %v1439
        %v1719 = vpop.xlane.xlu0 %1718
        %1720 = vmax.xlane.f32.xlu0 %v1442
        %v1721 = vpop.xlane.xlu0 %1720
        %1722 = vmax.xlane.f32.xlu0 %v1444
        %v1723 = vpop.xlane.xlu0 %1722
        %1724 = vmax.xlane.f32.xlu0 %v1447
        %v1725 = vpop.xlane.xlu0 %1724
        %1726 = vmax.xlane.f32.xlu0 %v1449
        %v1727 = vpop.xlane.xlu0 %1726
        %1728 = vmax.xlane.f32.xlu0 %v1452
        %v1729 = vpop.xlane.xlu0 %1728
        %1730 = vmax.xlane.f32.xlu0 %v1454
        %v1731 = vpop.xlane.xlu0 %1730
        %1732 = vmax.xlane.f32.xlu0 %v1457
        %v1733 = vpop.xlane.xlu0 %1732
        %1734 = vmax.xlane.f32.xlu0 %v1459
        %v1735 = vpop.xlane.xlu0 %1734
        %1736 = vmax.xlane.f32.xlu0 %v1462
        %v1737 = vpop.xlane.xlu0 %1736
        %1738 = vmax.xlane.f32.xlu0 %v1464
        %v1739 = vpop.xlane.xlu0 %1738
        %1740 = vmax.xlane.f32.xlu0 %v1467
        %v1741 = vpop.xlane.xlu0 %1740
        %1742 = vmax.xlane.f32.xlu0 %v1469
        %v1743 = vpop.xlane.xlu0 %1742
        %1744 = vmax.xlane.f32.xlu0 %v1472
        %v1745 = vpop.xlane.xlu0 %1744
        %1746 = vmax.xlane.f32.xlu0 %v1474
        %v1747 = vpop.xlane.xlu0 %1746
        %1748 = vmax.xlane.f32.xlu0 %v1477
        %v1749 = vpop.xlane.xlu0 %1748
        %1750 = vmax.xlane.f32.xlu0 %v1479
        %v1751 = vpop.xlane.xlu0 %1750
        %1752 = vmax.xlane.f32.xlu0 %v1482
        %v1753 = vpop.xlane.xlu0 %1752
        %1754 = vmax.xlane.f32.xlu0 %v1484
        %v1755 = vpop.xlane.xlu0 %1754
        %1756 = vmax.xlane.f32.xlu0 %v1487
        %v1757 = vpop.xlane.xlu0 %1756
        %1758 = vmax.xlane.f32.xlu0 %v1489
        %v1759 = vpop.xlane.xlu0 %1758
        %1760 = vmax.xlane.f32.xlu0 %v1492
        %v1761 = vpop.xlane.xlu0 %1760
        %1762 = vmax.xlane.f32.xlu0 %v1494
        %v1763 = vpop.xlane.xlu0 %1762
        %1764 = vmax.xlane.f32.xlu0 %v1497
        %v1765 = vpop.xlane.xlu0 %1764
        %1766 = vmax.xlane.f32.xlu0 %v1499
        %v1767 = vpop.xlane.xlu0 %1766
        %1768 = vmax.xlane.f32.xlu0 %v1502
        %v1769 = vpop.xlane.xlu0 %1768
        %1770 = vmax.xlane.f32.xlu0 %v1504
        %v1771 = vpop.xlane.xlu0 %1770
        %1772 = vmax.xlane.f32.xlu0 %v1507
        %v1773 = vpop.xlane.xlu0 %1772
        %1774 = vmax.xlane.f32.xlu0 %v1509
        %v1775 = vpop.xlane.xlu0 %1774
        %1776 = vmax.xlane.f32.xlu0 %v1512
        %v1777 = vpop.xlane.xlu0 %1776
        %1778 = vmax.xlane.f32.xlu0 %v1514
        %v1779 = vpop.xlane.xlu0 %1778
        %1780 = vmax.xlane.f32.xlu0 %v1517
        %v1781 = vpop.xlane.xlu0 %1780
        %1782 = vmax.xlane.f32.xlu0 %v1519
        %v1783 = vpop.xlane.xlu0 %1782
        %1784 = vmax.xlane.f32.xlu0 %v1522
        %v1785 = vpop.xlane.xlu0 %1784
        %1786 = vmax.xlane.f32.xlu0 %v1524
        %v1787 = vpop.xlane.xlu0 %1786
        %1788 = vmax.xlane.f32.xlu0 %v1527
        %v1789 = vpop.xlane.xlu0 %1788
        %1790 = vmax.xlane.f32.xlu0 %v1529
        %v1791 = vpop.xlane.xlu0 %1790
        %1792 = vmax.xlane.f32.xlu0 %v1532
        %v1793 = vpop.xlane.xlu0 %1792
        %1794 = vmax.xlane.f32.xlu0 %v1534
        %v1795 = vpop.xlane.xlu0 %1794
        %1796 = vmax.xlane.f32.xlu0 %v1537
        %v1797 = vpop.xlane.xlu0 %1796
        %1798 = vmax.xlane.f32.xlu0 %v1539
        %v1799 = vpop.xlane.xlu0 %1798
        %1800 = vmax.xlane.f32.xlu0 %v1542
        %v1801 = vpop.xlane.xlu0 %1800
        %1802 = vmax.xlane.f32.xlu0 %v1544
        %v1803 = vpop.xlane.xlu0 %1802
        %1804 = vmax.xlane.f32.xlu0 %v1547
        %v1805 = vpop.xlane.xlu0 %1804
        %1806 = vmax.xlane.f32.xlu0 %v1549
        %v1807 = vpop.xlane.xlu0 %1806
        %1808 = vmax.xlane.f32.xlu0 %v1552
        %v1809 = vpop.xlane.xlu0 %1808
        %1810 = vmax.xlane.f32.xlu0 %v1554
        %v1811 = vpop.xlane.xlu0 %1810
        %p1812 = scmp.eq.s32.totalorder %s28, 0
        // Predicated region
        $region53: #{tpu_custom_call.1} parent=43 // pred_check
          %p1813 = pneg %p1812
        $region54: #{tpu_custom_call.1} parent=43 // pred_check_branch
          %1815 = sbr.rel (%p1813) target = $region56
        $region55: #{tpu_custom_call.1} parent=43 // pred_region
          %vm1816 = vcmask 7168
          %1817 = vst.msk [vmem:[%s330] sm:$0xff] %vm1816, %v1557
          %1818 = vst.msk [vmem:[%s330 + $0x8] sm:$0xff] %vm1816, %v1559
          %1819 = vst.msk [vmem:[%s330 + $0x10] sm:$0xff] %vm1816, %v1561
          %1820 = vst.msk [vmem:[%s330 + $0x18] sm:$0xff] %vm1816, %v1563
          %1821 = vst.msk [vmem:[%s330 + $0x20] sm:$0xff] %vm1816, %v1565
          %1822 = vst.msk [vmem:[%s330 + $0x28] sm:$0xff] %vm1816, %v1567
          %1823 = vst.msk [vmem:[%s330 + $0x30] sm:$0xff] %vm1816, %v1569
          %1824 = vst.msk [vmem:[%s330 + $0x38] sm:$0xff] %vm1816, %v1571
          %1825 = vst.msk [vmem:[%s330 + $0x40] sm:$0xff] %vm1816, %v1573
          %1826 = vst.msk [vmem:[%s330 + $0x48] sm:$0xff] %vm1816, %v1575
          %1827 = vst.msk [vmem:[%s330 + $0x50] sm:$0xff] %vm1816, %v1577
          %1828 = vst.msk [vmem:[%s330 + $0x58] sm:$0xff] %vm1816, %v1579
          %1829 = vst.msk [vmem:[%s330 + $0x60] sm:$0xff] %vm1816, %v1581
          %1830 = vst.msk [vmem:[%s330 + $0x68] sm:$0xff] %vm1816, %v1583
          %1831 = vst.msk [vmem:[%s330 + $0x70] sm:$0xff] %vm1816, %v1585
          %1832 = vst.msk [vmem:[%s330 + $0x78] sm:$0xff] %vm1816, %v1587
          %1833 = vst.msk [vmem:[%s330 + $0x80] sm:$0xff] %vm1816, %v1589
          %1834 = vst.msk [vmem:[%s330 + $0x88] sm:$0xff] %vm1816, %v1591
          %1835 = vst.msk [vmem:[%s330 + $0x90] sm:$0xff] %vm1816, %v1593
          %1836 = vst.msk [vmem:[%s330 + $0x98] sm:$0xff] %vm1816, %v1595
          %1837 = vst.msk [vmem:[%s330 + $0xa0] sm:$0xff] %vm1816, %v1597
          %1838 = vst.msk [vmem:[%s330 + $0xa8] sm:$0xff] %vm1816, %v1599
          %1839 = vst.msk [vmem:[%s330 + $0xb0] sm:$0xff] %vm1816, %v1601
          %1840 = vst.msk [vmem:[%s330 + $0xb8] sm:$0xff] %vm1816, %v1603
          %1841 = vst.msk [vmem:[%s330 + $0xc0] sm:$0xff] %vm1816, %v1605
          %1842 = vst.msk [vmem:[%s330 + $0xc8] sm:$0xff] %vm1816, %v1607
          %1843 = vst.msk [vmem:[%s330 + $0xd0] sm:$0xff] %vm1816, %v1609
          %1844 = vst.msk [vmem:[%s330 + $0xd8] sm:$0xff] %vm1816, %v1611
          %1845 = vst.msk [vmem:[%s330 + $0xe0] sm:$0xff] %vm1816, %v1613
          %1846 = vst.msk [vmem:[%s330 + $0xe8] sm:$0xff] %vm1816, %v1615
          %1847 = vst.msk [vmem:[%s330 + $0xf0] sm:$0xff] %vm1816, %v1617
          %1848 = vst.msk [vmem:[%s330 + $0xf8] sm:$0xff] %vm1816, %v1619
          %1849 = vst.msk [vmem:[%s330 + $0x100] sm:$0xff] %vm1816, %v1621
          %1850 = vst.msk [vmem:[%s330 + $0x108] sm:$0xff] %vm1816, %v1623
          %1851 = vst.msk [vmem:[%s330 + $0x110] sm:$0xff] %vm1816, %v1625
          %1852 = vst.msk [vmem:[%s330 + $0x118] sm:$0xff] %vm1816, %v1627
          %1853 = vst.msk [vmem:[%s330 + $0x120] sm:$0xff] %vm1816, %v1629
          %1854 = vst.msk [vmem:[%s330 + $0x128] sm:$0xff] %vm1816, %v1631
          %1855 = vst.msk [vmem:[%s330 + $0x130] sm:$0xff] %vm1816, %v1633
          %1856 = vst.msk [vmem:[%s330 + $0x138] sm:$0xff] %vm1816, %v1635
          %1857 = vst.msk [vmem:[%s330 + $0x140] sm:$0xff] %vm1816, %v1637
          %1858 = vst.msk [vmem:[%s330 + $0x148] sm:$0xff] %vm1816, %v1639
          %1859 = vst.msk [vmem:[%s330 + $0x150] sm:$0xff] %vm1816, %v1641
          %1860 = vst.msk [vmem:[%s330 + $0x158] sm:$0xff] %vm1816, %v1643
          %1861 = vst.msk [vmem:[%s330 + $0x160] sm:$0xff] %vm1816, %v1645
          %1862 = vst.msk [vmem:[%s330 + $0x168] sm:$0xff] %vm1816, %v1647
          %1863 = vst.msk [vmem:[%s330 + $0x170] sm:$0xff] %vm1816, %v1649
          %1864 = vst.msk [vmem:[%s330 + $0x178] sm:$0xff] %vm1816, %v1651
          %1865 = vst.msk [vmem:[%s330 + $0x180] sm:$0xff] %vm1816, %v1653
          %1866 = vst.msk [vmem:[%s330 + $0x188] sm:$0xff] %vm1816, %v1655
          %1867 = vst.msk [vmem:[%s330 + $0x190] sm:$0xff] %vm1816, %v1657
          %1868 = vst.msk [vmem:[%s330 + $0x198] sm:$0xff] %vm1816, %v1659
          %1869 = vst.msk [vmem:[%s330 + $0x1a0] sm:$0xff] %vm1816, %v1661
          %1870 = vst.msk [vmem:[%s330 + $0x1a8] sm:$0xff] %vm1816, %v1663
          %1871 = vst.msk [vmem:[%s330 + $0x1b0] sm:$0xff] %vm1816, %v1665
          %1872 = vst.msk [vmem:[%s330 + $0x1b8] sm:$0xff] %vm1816, %v1667
          %1873 = vst.msk [vmem:[%s330 + $0x1c0] sm:$0xff] %vm1816, %v1669
          %1874 = vst.msk [vmem:[%s330 + $0x1c8] sm:$0xff] %vm1816, %v1671
          %1875 = vst.msk [vmem:[%s330 + $0x1d0] sm:$0xff] %vm1816, %v1673
          %1876 = vst.msk [vmem:[%s330 + $0x1d8] sm:$0xff] %vm1816, %v1675
          %1877 = vst.msk [vmem:[%s330 + $0x1e0] sm:$0xff] %vm1816, %v1677
          %1878 = vst.msk [vmem:[%s330 + $0x1e8] sm:$0xff] %vm1816, %v1679
          %1879 = vst.msk [vmem:[%s330 + $0x1f0] sm:$0xff] %vm1816, %v1681
          %1880 = vst.msk [vmem:[%s330 + $0x1f8] sm:$0xff] %vm1816, %v1683
          %1881 = vst.msk [vmem:[%s330 + $0x200] sm:$0xff] %vm1816, %v1685
          %1882 = vst.msk [vmem:[%s330 + $0x208] sm:$0xff] %vm1816, %v1687
          %1883 = vst.msk [vmem:[%s330 + $0x210] sm:$0xff] %vm1816, %v1689
          %1884 = vst.msk [vmem:[%s330 + $0x218] sm:$0xff] %vm1816, %v1691
          %1885 = vst.msk [vmem:[%s330 + $0x220] sm:$0xff] %vm1816, %v1693
          %1886 = vst.msk [vmem:[%s330 + $0x228] sm:$0xff] %vm1816, %v1695
          %1887 = vst.msk [vmem:[%s330 + $0x230] sm:$0xff] %vm1816, %v1697
          %1888 = vst.msk [vmem:[%s330 + $0x238] sm:$0xff] %vm1816, %v1699
          %1889 = vst.msk [vmem:[%s330 + $0x240] sm:$0xff] %vm1816, %v1701
          %1890 = vst.msk [vmem:[%s330 + $0x248] sm:$0xff] %vm1816, %v1703
          %1891 = vst.msk [vmem:[%s330 + $0x250] sm:$0xff] %vm1816, %v1705
          %1892 = vst.msk [vmem:[%s330 + $0x258] sm:$0xff] %vm1816, %v1707
          %1893 = vst.msk [vmem:[%s330 + $0x260] sm:$0xff] %vm1816, %v1709
          %1894 = vst.msk [vmem:[%s330 + $0x268] sm:$0xff] %vm1816, %v1711
          %1895 = vst.msk [vmem:[%s330 + $0x270] sm:$0xff] %vm1816, %v1713
          %1896 = vst.msk [vmem:[%s330 + $0x278] sm:$0xff] %vm1816, %v1715
          %1897 = vst.msk [vmem:[%s330 + $0x280] sm:$0xff] %vm1816, %v1717
          %1898 = vst.msk [vmem:[%s330 + $0x288] sm:$0xff] %vm1816, %v1719
          %1899 = vst.msk [vmem:[%s330 + $0x290] sm:$0xff] %vm1816, %v1721
          %1900 = vst.msk [vmem:[%s330 + $0x298] sm:$0xff] %vm1816, %v1723
          %1901 = vst.msk [vmem:[%s330 + $0x2a0] sm:$0xff] %vm1816, %v1725
          %1902 = vst.msk [vmem:[%s330 + $0x2a8] sm:$0xff] %vm1816, %v1727
          %1903 = vst.msk [vmem:[%s330 + $0x2b0] sm:$0xff] %vm1816, %v1729
          %1904 = vst.msk [vmem:[%s330 + $0x2b8] sm:$0xff] %vm1816, %v1731
          %1905 = vst.msk [vmem:[%s330 + $0x2c0] sm:$0xff] %vm1816, %v1733
          %1906 = vst.msk [vmem:[%s330 + $0x2c8] sm:$0xff] %vm1816, %v1735
          %1907 = vst.msk [vmem:[%s330 + $0x2d0] sm:$0xff] %vm1816, %v1737
          %1908 = vst.msk [vmem:[%s330 + $0x2d8] sm:$0xff] %vm1816, %v1739
          %1909 = vst.msk [vmem:[%s330 + $0x2e0] sm:$0xff] %vm1816, %v1741
          %1910 = vst.msk [vmem:[%s330 + $0x2e8] sm:$0xff] %vm1816, %v1743
          %1911 = vst.msk [vmem:[%s330 + $0x2f0] sm:$0xff] %vm1816, %v1745
          %1912 = vst.msk [vmem:[%s330 + $0x2f8] sm:$0xff] %vm1816, %v1747
          %1913 = vst.msk [vmem:[%s330 + $0x300] sm:$0xff] %vm1816, %v1749
          %1914 = vst.msk [vmem:[%s330 + $0x308] sm:$0xff] %vm1816, %v1751
          %1915 = vst.msk [vmem:[%s330 + $0x310] sm:$0xff] %vm1816, %v1753
          %1916 = vst.msk [vmem:[%s330 + $0x318] sm:$0xff] %vm1816, %v1755
          %1917 = vst.msk [vmem:[%s330 + $0x320] sm:$0xff] %vm1816, %v1757
          %1918 = vst.msk [vmem:[%s330 + $0x328] sm:$0xff] %vm1816, %v1759
          %1919 = vst.msk [vmem:[%s330 + $0x330] sm:$0xff] %vm1816, %v1761
          %1920 = vst.msk [vmem:[%s330 + $0x338] sm:$0xff] %vm1816, %v1763
          %1921 = vst.msk [vmem:[%s330 + $0x340] sm:$0xff] %vm1816, %v1765
          %1922 = vst.msk [vmem:[%s330 + $0x348] sm:$0xff] %vm1816, %v1767
          %1923 = vst.msk [vmem:[%s330 + $0x350] sm:$0xff] %vm1816, %v1769
          %1924 = vst.msk [vmem:[%s330 + $0x358] sm:$0xff] %vm1816, %v1771
          %1925 = vst.msk [vmem:[%s330 + $0x360] sm:$0xff] %vm1816, %v1773
          %1926 = vst.msk [vmem:[%s330 + $0x368] sm:$0xff] %vm1816, %v1775
          %1927 = vst.msk [vmem:[%s330 + $0x370] sm:$0xff] %vm1816, %v1777
          %1928 = vst.msk [vmem:[%s330 + $0x378] sm:$0xff] %vm1816, %v1779
          %1929 = vst.msk [vmem:[%s330 + $0x380] sm:$0xff] %vm1816, %v1781
          %1930 = vst.msk [vmem:[%s330 + $0x388] sm:$0xff] %vm1816, %v1783
          %1931 = vst.msk [vmem:[%s330 + $0x390] sm:$0xff] %vm1816, %v1785
          %1932 = vst.msk [vmem:[%s330 + $0x398] sm:$0xff] %vm1816, %v1787
          %1933 = vst.msk [vmem:[%s330 + $0x3a0] sm:$0xff] %vm1816, %v1789
          %1934 = vst.msk [vmem:[%s330 + $0x3a8] sm:$0xff] %vm1816, %v1791
          %1935 = vst.msk [vmem:[%s330 + $0x3b0] sm:$0xff] %vm1816, %v1793
          %1936 = vst.msk [vmem:[%s330 + $0x3b8] sm:$0xff] %vm1816, %v1795
          %1937 = vst.msk [vmem:[%s330 + $0x3c0] sm:$0xff] %vm1816, %v1797
          %1938 = vst.msk [vmem:[%s330 + $0x3c8] sm:$0xff] %vm1816, %v1799
          %1939 = vst.msk [vmem:[%s330 + $0x3d0] sm:$0xff] %vm1816, %v1801
          %1940 = vst.msk [vmem:[%s330 + $0x3d8] sm:$0xff] %vm1816, %v1803
          %1941 = vst.msk [vmem:[%s330 + $0x3e0] sm:$0xff] %vm1816, %v1805
          %1942 = vst.msk [vmem:[%s330 + $0x3e8] sm:$0xff] %vm1816, %v1807
          %1943 = vst.msk [vmem:[%s330 + $0x3f0] sm:$0xff] %vm1816, %v1809
          %1944 = vst.msk [vmem:[%s330 + $0x3f8] sm:$0xff] %vm1816, %v1811
        $region56: #{tpu_custom_call.1} parent=43 // pred_fallthru
          _
        %p1945 = scmp.gt.s32.totalorder %s28, 0
        // Predicated region
        $region57: #{tpu_custom_call.1} parent=43 // pred_check
          %p1946 = pneg %p1945
        $region58: #{tpu_custom_call.1} parent=43 // pred_check_branch
          %1948 = sbr.rel (%p1946) target = $region60
        $region59: #{tpu_custom_call.1} parent=43 // pred_region
          %v1949 = vld [vmem:[%s330] sm:$0xff]
          %v1950 = vld [vmem:[%s330 + $0x8] sm:$0xff]
          %v1951 = vld [vmem:[%s330 + $0x10] sm:$0xff]
          %v1952 = vld [vmem:[%s330 + $0x18] sm:$0xff]
          %v1953 = vld [vmem:[%s330 + $0x20] sm:$0xff]
          %v1954 = vld [vmem:[%s330 + $0x28] sm:$0xff]
          %v1955 = vld [vmem:[%s330 + $0x30] sm:$0xff]
          %v1956 = vld [vmem:[%s330 + $0x38] sm:$0xff]
          %v1957 = vld [vmem:[%s330 + $0x40] sm:$0xff]
          %v1958 = vld [vmem:[%s330 + $0x48] sm:$0xff]
          %v1959 = vld [vmem:[%s330 + $0x50] sm:$0xff]
          %v1960 = vld [vmem:[%s330 + $0x58] sm:$0xff]
          %v1961 = vld [vmem:[%s330 + $0x60] sm:$0xff]
          %v1962 = vld [vmem:[%s330 + $0x68] sm:$0xff]
          %v1963 = vld [vmem:[%s330 + $0x70] sm:$0xff]
          %v1964 = vld [vmem:[%s330 + $0x78] sm:$0xff]
          %v1965 = vld [vmem:[%s330 + $0x80] sm:$0xff]
          %v1966 = vld [vmem:[%s330 + $0x88] sm:$0xff]
          %v1967 = vld [vmem:[%s330 + $0x90] sm:$0xff]
          %v1968 = vld [vmem:[%s330 + $0x98] sm:$0xff]
          %v1969 = vld [vmem:[%s330 + $0xa0] sm:$0xff]
          %v1970 = vld [vmem:[%s330 + $0xa8] sm:$0xff]
          %v1971 = vld [vmem:[%s330 + $0xb0] sm:$0xff]
          %v1972 = vld [vmem:[%s330 + $0xb8] sm:$0xff]
          %v1973 = vld [vmem:[%s330 + $0xc0] sm:$0xff]
          %v1974 = vld [vmem:[%s330 + $0xc8] sm:$0xff]
          %v1975 = vld [vmem:[%s330 + $0xd0] sm:$0xff]
          %v1976 = vld [vmem:[%s330 + $0xd8] sm:$0xff]
          %v1977 = vld [vmem:[%s330 + $0xe0] sm:$0xff]
          %v1978 = vld [vmem:[%s330 + $0xe8] sm:$0xff]
          %v1979 = vld [vmem:[%s330 + $0xf0] sm:$0xff]
          %v1980 = vld [vmem:[%s330 + $0xf8] sm:$0xff]
          %v1981 = vld [vmem:[%s330 + $0x100] sm:$0xff]
          %v1982 = vld [vmem:[%s330 + $0x108] sm:$0xff]
          %v1983 = vld [vmem:[%s330 + $0x110] sm:$0xff]
          %v1984 = vld [vmem:[%s330 + $0x118] sm:$0xff]
          %v1985 = vld [vmem:[%s330 + $0x120] sm:$0xff]
          %v1986 = vld [vmem:[%s330 + $0x128] sm:$0xff]
          %v1987 = vld [vmem:[%s330 + $0x130] sm:$0xff]
          %v1988 = vld [vmem:[%s330 + $0x138] sm:$0xff]
          %v1989 = vld [vmem:[%s330 + $0x140] sm:$0xff]
          %v1990 = vld [vmem:[%s330 + $0x148] sm:$0xff]
          %v1991 = vld [vmem:[%s330 + $0x150] sm:$0xff]
          %v1992 = vld [vmem:[%s330 + $0x158] sm:$0xff]
          %v1993 = vld [vmem:[%s330 + $0x160] sm:$0xff]
          %v1994 = vld [vmem:[%s330 + $0x168] sm:$0xff]
          %v1995 = vld [vmem:[%s330 + $0x170] sm:$0xff]
          %v1996 = vld [vmem:[%s330 + $0x178] sm:$0xff]
          %v1997 = vld [vmem:[%s330 + $0x180] sm:$0xff]
          %v1998 = vld [vmem:[%s330 + $0x188] sm:$0xff]
          %v1999 = vld [vmem:[%s330 + $0x190] sm:$0xff]
          %v2000 = vld [vmem:[%s330 + $0x198] sm:$0xff]
          %v2001 = vld [vmem:[%s330 + $0x1a0] sm:$0xff]
          %v2002 = vld [vmem:[%s330 + $0x1a8] sm:$0xff]
          %v2003 = vld [vmem:[%s330 + $0x1b0] sm:$0xff]
          %v2004 = vld [vmem:[%s330 + $0x1b8] sm:$0xff]
          %v2005 = vld [vmem:[%s330 + $0x1c0] sm:$0xff]
          %v2006 = vld [vmem:[%s330 + $0x1c8] sm:$0xff]
          %v2007 = vld [vmem:[%s330 + $0x1d0] sm:$0xff]
          %v2008 = vld [vmem:[%s330 + $0x1d8] sm:$0xff]
          %v2009 = vld [vmem:[%s330 + $0x1e0] sm:$0xff]
          %v2010 = vld [vmem:[%s330 + $0x1e8] sm:$0xff]
          %v2011 = vld [vmem:[%s330 + $0x1f0] sm:$0xff]
          %v2012 = vld [vmem:[%s330 + $0x1f8] sm:$0xff]
          %v2013 = vld [vmem:[%s330 + $0x200] sm:$0xff]
          %v2014 = vld [vmem:[%s330 + $0x208] sm:$0xff]
          %v2015 = vld [vmem:[%s330 + $0x210] sm:$0xff]
          %v2016 = vld [vmem:[%s330 + $0x218] sm:$0xff]
          %v2017 = vld [vmem:[%s330 + $0x220] sm:$0xff]
          %v2018 = vld [vmem:[%s330 + $0x228] sm:$0xff]
          %v2019 = vld [vmem:[%s330 + $0x230] sm:$0xff]
          %v2020 = vld [vmem:[%s330 + $0x238] sm:$0xff]
          %v2021 = vld [vmem:[%s330 + $0x240] sm:$0xff]
          %v2022 = vld [vmem:[%s330 + $0x248] sm:$0xff]
          %v2023 = vld [vmem:[%s330 + $0x250] sm:$0xff]
          %v2024 = vld [vmem:[%s330 + $0x258] sm:$0xff]
          %v2025 = vld [vmem:[%s330 + $0x260] sm:$0xff]
          %v2026 = vld [vmem:[%s330 + $0x268] sm:$0xff]
          %v2027 = vld [vmem:[%s330 + $0x270] sm:$0xff]
          %v2028 = vld [vmem:[%s330 + $0x278] sm:$0xff]
          %v2029 = vld [vmem:[%s330 + $0x280] sm:$0xff]
          %v2030 = vld [vmem:[%s330 + $0x288] sm:$0xff]
          %v2031 = vld [vmem:[%s330 + $0x290] sm:$0xff]
          %v2032 = vld [vmem:[%s330 + $0x298] sm:$0xff]
          %v2033 = vld [vmem:[%s330 + $0x2a0] sm:$0xff]
          %v2034 = vld [vmem:[%s330 + $0x2a8] sm:$0xff]
          %v2035 = vld [vmem:[%s330 + $0x2b0] sm:$0xff]
          %v2036 = vld [vmem:[%s330 + $0x2b8] sm:$0xff]
          %v2037 = vld [vmem:[%s330 + $0x2c0] sm:$0xff]
          %v2038 = vld [vmem:[%s330 + $0x2c8] sm:$0xff]
          %v2039 = vld [vmem:[%s330 + $0x2d0] sm:$0xff]
          %v2040 = vld [vmem:[%s330 + $0x2d8] sm:$0xff]
          %v2041 = vld [vmem:[%s330 + $0x2e0] sm:$0xff]
          %v2042 = vld [vmem:[%s330 + $0x2e8] sm:$0xff]
          %v2043 = vld [vmem:[%s330 + $0x2f0] sm:$0xff]
          %v2044 = vld [vmem:[%s330 + $0x2f8] sm:$0xff]
          %v2045 = vld [vmem:[%s330 + $0x300] sm:$0xff]
          %v2046 = vld [vmem:[%s330 + $0x308] sm:$0xff]
          %v2047 = vld [vmem:[%s330 + $0x310] sm:$0xff]
          %v2048 = vld [vmem:[%s330 + $0x318] sm:$0xff]
          %v2049 = vld [vmem:[%s330 + $0x320] sm:$0xff]
          %v2050 = vld [vmem:[%s330 + $0x328] sm:$0xff]
          %v2051 = vld [vmem:[%s330 + $0x330] sm:$0xff]
          %v2052 = vld [vmem:[%s330 + $0x338] sm:$0xff]
          %v2053 = vld [vmem:[%s330 + $0x340] sm:$0xff]
          %v2054 = vld [vmem:[%s330 + $0x348] sm:$0xff]
          %v2055 = vld [vmem:[%s330 + $0x350] sm:$0xff]
          %v2056 = vld [vmem:[%s330 + $0x358] sm:$0xff]
          %v2057 = vld [vmem:[%s330 + $0x360] sm:$0xff]
          %v2058 = vld [vmem:[%s330 + $0x368] sm:$0xff]
          %v2059 = vld [vmem:[%s330 + $0x370] sm:$0xff]
          %v2060 = vld [vmem:[%s330 + $0x378] sm:$0xff]
          %v2061 = vld [vmem:[%s330 + $0x380] sm:$0xff]
          %v2062 = vld [vmem:[%s330 + $0x388] sm:$0xff]
          %v2063 = vld [vmem:[%s330 + $0x390] sm:$0xff]
          %v2064 = vld [vmem:[%s330 + $0x398] sm:$0xff]
          %v2065 = vld [vmem:[%s330 + $0x3a0] sm:$0xff]
          %v2066 = vld [vmem:[%s330 + $0x3a8] sm:$0xff]
          %v2067 = vld [vmem:[%s330 + $0x3b0] sm:$0xff]
          %v2068 = vld [vmem:[%s330 + $0x3b8] sm:$0xff]
          %v2069 = vld [vmem:[%s330 + $0x3c0] sm:$0xff]
          %v2070 = vld [vmem:[%s330 + $0x3c8] sm:$0xff]
          %v2071 = vld [vmem:[%s330 + $0x3d0] sm:$0xff]
          %v2072 = vld [vmem:[%s330 + $0x3d8] sm:$0xff]
          %v2073 = vld [vmem:[%s330 + $0x3e0] sm:$0xff]
          %v2074 = vld [vmem:[%s330 + $0x3e8] sm:$0xff]
          %v2075 = vld [vmem:[%s330 + $0x3f0] sm:$0xff]
          %v2076 = vld [vmem:[%s330 + $0x3f8] sm:$0xff]
          %v2077 = vmax.f32 %v1949, %v1557
          %v2078 = vmax.f32 %v1950, %v1559
          %v2079 = vmax.f32 %v1951, %v1561
          %v2080 = vmax.f32 %v1952, %v1563
          %v2081 = vmax.f32 %v1953, %v1565
          %v2082 = vmax.f32 %v1954, %v1567
          %v2083 = vmax.f32 %v1955, %v1569
          %v2084 = vmax.f32 %v1956, %v1571
          %v2085 = vmax.f32 %v1957, %v1573
          %v2086 = vmax.f32 %v1958, %v1575
          %v2087 = vmax.f32 %v1959, %v1577
          %v2088 = vmax.f32 %v1960, %v1579
          %v2089 = vmax.f32 %v1961, %v1581
          %v2090 = vmax.f32 %v1962, %v1583
          %v2091 = vmax.f32 %v1963, %v1585
          %v2092 = vmax.f32 %v1964, %v1587
          %v2093 = vmax.f32 %v1965, %v1589
          %v2094 = vmax.f32 %v1966, %v1591
          %v2095 = vmax.f32 %v1967, %v1593
          %v2096 = vmax.f32 %v1968, %v1595
          %v2097 = vmax.f32 %v1969, %v1597
          %v2098 = vmax.f32 %v1970, %v1599
          %v2099 = vmax.f32 %v1971, %v1601
          %v2100 = vmax.f32 %v1972, %v1603
          %v2101 = vmax.f32 %v1973, %v1605
          %v2102 = vmax.f32 %v1974, %v1607
          %v2103 = vmax.f32 %v1975, %v1609
          %v2104 = vmax.f32 %v1976, %v1611
          %v2105 = vmax.f32 %v1977, %v1613
          %v2106 = vmax.f32 %v1978, %v1615
          %v2107 = vmax.f32 %v1979, %v1617
          %v2108 = vmax.f32 %v1980, %v1619
          %v2109 = vmax.f32 %v1981, %v1621
          %v2110 = vmax.f32 %v1982, %v1623
          %v2111 = vmax.f32 %v1983, %v1625
          %v2112 = vmax.f32 %v1984, %v1627
          %v2113 = vmax.f32 %v1985, %v1629
          %v2114 = vmax.f32 %v1986, %v1631
          %v2115 = vmax.f32 %v1987, %v1633
          %v2116 = vmax.f32 %v1988, %v1635
          %v2117 = vmax.f32 %v1989, %v1637
          %v2118 = vmax.f32 %v1990, %v1639
          %v2119 = vmax.f32 %v1991, %v1641
          %v2120 = vmax.f32 %v1992, %v1643
          %v2121 = vmax.f32 %v1993, %v1645
          %v2122 = vmax.f32 %v1994, %v1647
          %v2123 = vmax.f32 %v1995, %v1649
          %v2124 = vmax.f32 %v1996, %v1651
          %v2125 = vmax.f32 %v1997, %v1653
          %v2126 = vmax.f32 %v1998, %v1655
          %v2127 = vmax.f32 %v1999, %v1657
          %v2128 = vmax.f32 %v2000, %v1659
          %v2129 = vmax.f32 %v2001, %v1661
          %v2130 = vmax.f32 %v2002, %v1663
          %v2131 = vmax.f32 %v2003, %v1665
          %v2132 = vmax.f32 %v2004, %v1667
          %v2133 = vmax.f32 %v2005, %v1669
          %v2134 = vmax.f32 %v2006, %v1671
          %v2135 = vmax.f32 %v2007, %v1673
          %v2136 = vmax.f32 %v2008, %v1675
          %v2137 = vmax.f32 %v2009, %v1677
          %v2138 = vmax.f32 %v2010, %v1679
          %v2139 = vmax.f32 %v2011, %v1681
          %v2140 = vmax.f32 %v2012, %v1683
          %v2141 = vmax.f32 %v2013, %v1685
          %v2142 = vmax.f32 %v2014, %v1687
          %v2143 = vmax.f32 %v2015, %v1689
          %v2144 = vmax.f32 %v2016, %v1691
          %v2145 = vmax.f32 %v2017, %v1693
          %v2146 = vmax.f32 %v2018, %v1695
          %v2147 = vmax.f32 %v2019, %v1697
          %v2148 = vmax.f32 %v2020, %v1699
          %v2149 = vmax.f32 %v2021, %v1701
          %v2150 = vmax.f32 %v2022, %v1703
          %v2151 = vmax.f32 %v2023, %v1705
          %v2152 = vmax.f32 %v2024, %v1707
          %v2153 = vmax.f32 %v2025, %v1709
          %v2154 = vmax.f32 %v2026, %v1711
          %v2155 = vmax.f32 %v2027, %v1713
          %v2156 = vmax.f32 %v2028, %v1715
          %v2157 = vmax.f32 %v2029, %v1717
          %v2158 = vmax.f32 %v2030, %v1719
          %v2159 = vmax.f32 %v2031, %v1721
          %v2160 = vmax.f32 %v2032, %v1723
          %v2161 = vmax.f32 %v2033, %v1725
          %v2162 = vmax.f32 %v2034, %v1727
          %v2163 = vmax.f32 %v2035, %v1729
          %v2164 = vmax.f32 %v2036, %v1731
          %v2165 = vmax.f32 %v2037, %v1733
          %v2166 = vmax.f32 %v2038, %v1735
          %v2167 = vmax.f32 %v2039, %v1737
          %v2168 = vmax.f32 %v2040, %v1739
          %v2169 = vmax.f32 %v2041, %v1741
          %v2170 = vmax.f32 %v2042, %v1743
          %v2171 = vmax.f32 %v2043, %v1745
          %v2172 = vmax.f32 %v2044, %v1747
          %v2173 = vmax.f32 %v2045, %v1749
          %v2174 = vmax.f32 %v2046, %v1751
          %v2175 = vmax.f32 %v2047, %v1753
          %v2176 = vmax.f32 %v2048, %v1755
          %v2177 = vmax.f32 %v2049, %v1757
          %v2178 = vmax.f32 %v2050, %v1759
          %v2179 = vmax.f32 %v2051, %v1761
          %v2180 = vmax.f32 %v2052, %v1763
          %v2181 = vmax.f32 %v2053, %v1765
          %v2182 = vmax.f32 %v2054, %v1767
          %v2183 = vmax.f32 %v2055, %v1769
          %v2184 = vmax.f32 %v2056, %v1771
          %v2185 = vmax.f32 %v2057, %v1773
          %v2186 = vmax.f32 %v2058, %v1775
          %v2187 = vmax.f32 %v2059, %v1777
          %v2188 = vmax.f32 %v2060, %v1779
          %v2189 = vmax.f32 %v2061, %v1781
          %v2190 = vmax.f32 %v2062, %v1783
          %v2191 = vmax.f32 %v2063, %v1785
          %v2192 = vmax.f32 %v2064, %v1787
          %v2193 = vmax.f32 %v2065, %v1789
          %v2194 = vmax.f32 %v2066, %v1791
          %v2195 = vmax.f32 %v2067, %v1793
          %v2196 = vmax.f32 %v2068, %v1795
          %v2197 = vmax.f32 %v2069, %v1797
          %v2198 = vmax.f32 %v2070, %v1799
          %v2199 = vmax.f32 %v2071, %v1801
          %v2200 = vmax.f32 %v2072, %v1803
          %v2201 = vmax.f32 %v2073, %v1805
          %v2202 = vmax.f32 %v2074, %v1807
          %v2203 = vmax.f32 %v2075, %v1809
          %v2204 = vmax.f32 %v2076, %v1811
          %vm2205 = vcmask 7168
          %2206 = vst.msk [vmem:[%s330] sm:$0xff] %vm2205, %v2077
          %2207 = vst.msk [vmem:[%s330 + $0x8] sm:$0xff] %vm2205, %v2078
          %2208 = vst.msk [vmem:[%s330 + $0x10] sm:$0xff] %vm2205, %v2079
          %2209 = vst.msk [vmem:[%s330 + $0x18] sm:$0xff] %vm2205, %v2080
          %2210 = vst.msk [vmem:[%s330 + $0x20] sm:$0xff] %vm2205, %v2081
          %2211 = vst.msk [vmem:[%s330 + $0x28] sm:$0xff] %vm2205, %v2082
          %2212 = vst.msk [vmem:[%s330 + $0x30] sm:$0xff] %vm2205, %v2083
          %2213 = vst.msk [vmem:[%s330 + $0x38] sm:$0xff] %vm2205, %v2084
          %2214 = vst.msk [vmem:[%s330 + $0x40] sm:$0xff] %vm2205, %v2085
          %2215 = vst.msk [vmem:[%s330 + $0x48] sm:$0xff] %vm2205, %v2086
          %2216 = vst.msk [vmem:[%s330 + $0x50] sm:$0xff] %vm2205, %v2087
          %2217 = vst.msk [vmem:[%s330 + $0x58] sm:$0xff] %vm2205, %v2088
          %2218 = vst.msk [vmem:[%s330 + $0x60] sm:$0xff] %vm2205, %v2089
          %2219 = vst.msk [vmem:[%s330 + $0x68] sm:$0xff] %vm2205, %v2090
          %2220 = vst.msk [vmem:[%s330 + $0x70] sm:$0xff] %vm2205, %v2091
          %2221 = vst.msk [vmem:[%s330 + $0x78] sm:$0xff] %vm2205, %v2092
          %2222 = vst.msk [vmem:[%s330 + $0x80] sm:$0xff] %vm2205, %v2093
          %2223 = vst.msk [vmem:[%s330 + $0x88] sm:$0xff] %vm2205, %v2094
          %2224 = vst.msk [vmem:[%s330 + $0x90] sm:$0xff] %vm2205, %v2095
          %2225 = vst.msk [vmem:[%s330 + $0x98] sm:$0xff] %vm2205, %v2096
          %2226 = vst.msk [vmem:[%s330 + $0xa0] sm:$0xff] %vm2205, %v2097
          %2227 = vst.msk [vmem:[%s330 + $0xa8] sm:$0xff] %vm2205, %v2098
          %2228 = vst.msk [vmem:[%s330 + $0xb0] sm:$0xff] %vm2205, %v2099
          %2229 = vst.msk [vmem:[%s330 + $0xb8] sm:$0xff] %vm2205, %v2100
          %2230 = vst.msk [vmem:[%s330 + $0xc0] sm:$0xff] %vm2205, %v2101
          %2231 = vst.msk [vmem:[%s330 + $0xc8] sm:$0xff] %vm2205, %v2102
          %2232 = vst.msk [vmem:[%s330 + $0xd0] sm:$0xff] %vm2205, %v2103
          %2233 = vst.msk [vmem:[%s330 + $0xd8] sm:$0xff] %vm2205, %v2104
          %2234 = vst.msk [vmem:[%s330 + $0xe0] sm:$0xff] %vm2205, %v2105
          %2235 = vst.msk [vmem:[%s330 + $0xe8] sm:$0xff] %vm2205, %v2106
          %2236 = vst.msk [vmem:[%s330 + $0xf0] sm:$0xff] %vm2205, %v2107
          %2237 = vst.msk [vmem:[%s330 + $0xf8] sm:$0xff] %vm2205, %v2108
          %2238 = vst.msk [vmem:[%s330 + $0x100] sm:$0xff] %vm2205, %v2109
          %2239 = vst.msk [vmem:[%s330 + $0x108] sm:$0xff] %vm2205, %v2110
          %2240 = vst.msk [vmem:[%s330 + $0x110] sm:$0xff] %vm2205, %v2111
          %2241 = vst.msk [vmem:[%s330 + $0x118] sm:$0xff] %vm2205, %v2112
          %2242 = vst.msk [vmem:[%s330 + $0x120] sm:$0xff] %vm2205, %v2113
          %2243 = vst.msk [vmem:[%s330 + $0x128] sm:$0xff] %vm2205, %v2114
          %2244 = vst.msk [vmem:[%s330 + $0x130] sm:$0xff] %vm2205, %v2115
          %2245 = vst.msk [vmem:[%s330 + $0x138] sm:$0xff] %vm2205, %v2116
          %2246 = vst.msk [vmem:[%s330 + $0x140] sm:$0xff] %vm2205, %v2117
          %2247 = vst.msk [vmem:[%s330 + $0x148] sm:$0xff] %vm2205, %v2118
          %2248 = vst.msk [vmem:[%s330 + $0x150] sm:$0xff] %vm2205, %v2119
          %2249 = vst.msk [vmem:[%s330 + $0x158] sm:$0xff] %vm2205, %v2120
          %2250 = vst.msk [vmem:[%s330 + $0x160] sm:$0xff] %vm2205, %v2121
          %2251 = vst.msk [vmem:[%s330 + $0x168] sm:$0xff] %vm2205, %v2122
          %2252 = vst.msk [vmem:[%s330 + $0x170] sm:$0xff] %vm2205, %v2123
          %2253 = vst.msk [vmem:[%s330 + $0x178] sm:$0xff] %vm2205, %v2124
          %2254 = vst.msk [vmem:[%s330 + $0x180] sm:$0xff] %vm2205, %v2125
          %2255 = vst.msk [vmem:[%s330 + $0x188] sm:$0xff] %vm2205, %v2126
          %2256 = vst.msk [vmem:[%s330 + $0x190] sm:$0xff] %vm2205, %v2127
          %2257 = vst.msk [vmem:[%s330 + $0x198] sm:$0xff] %vm2205, %v2128
          %2258 = vst.msk [vmem:[%s330 + $0x1a0] sm:$0xff] %vm2205, %v2129
          %2259 = vst.msk [vmem:[%s330 + $0x1a8] sm:$0xff] %vm2205, %v2130
          %2260 = vst.msk [vmem:[%s330 + $0x1b0] sm:$0xff] %vm2205, %v2131
          %2261 = vst.msk [vmem:[%s330 + $0x1b8] sm:$0xff] %vm2205, %v2132
          %2262 = vst.msk [vmem:[%s330 + $0x1c0] sm:$0xff] %vm2205, %v2133
          %2263 = vst.msk [vmem:[%s330 + $0x1c8] sm:$0xff] %vm2205, %v2134
          %2264 = vst.msk [vmem:[%s330 + $0x1d0] sm:$0xff] %vm2205, %v2135
          %2265 = vst.msk [vmem:[%s330 + $0x1d8] sm:$0xff] %vm2205, %v2136
          %2266 = vst.msk [vmem:[%s330 + $0x1e0] sm:$0xff] %vm2205, %v2137
          %2267 = vst.msk [vmem:[%s330 + $0x1e8] sm:$0xff] %vm2205, %v2138
          %2268 = vst.msk [vmem:[%s330 + $0x1f0] sm:$0xff] %vm2205, %v2139
          %2269 = vst.msk [vmem:[%s330 + $0x1f8] sm:$0xff] %vm2205, %v2140
          %2270 = vst.msk [vmem:[%s330 + $0x200] sm:$0xff] %vm2205, %v2141
          %2271 = vst.msk [vmem:[%s330 + $0x208] sm:$0xff] %vm2205, %v2142
          %2272 = vst.msk [vmem:[%s330 + $0x210] sm:$0xff] %vm2205, %v2143
          %2273 = vst.msk [vmem:[%s330 + $0x218] sm:$0xff] %vm2205, %v2144
          %2274 = vst.msk [vmem:[%s330 + $0x220] sm:$0xff] %vm2205, %v2145
          %2275 = vst.msk [vmem:[%s330 + $0x228] sm:$0xff] %vm2205, %v2146
          %2276 = vst.msk [vmem:[%s330 + $0x230] sm:$0xff] %vm2205, %v2147
          %2277 = vst.msk [vmem:[%s330 + $0x238] sm:$0xff] %vm2205, %v2148
          %2278 = vst.msk [vmem:[%s330 + $0x240] sm:$0xff] %vm2205, %v2149
          %2279 = vst.msk [vmem:[%s330 + $0x248] sm:$0xff] %vm2205, %v2150
          %2280 = vst.msk [vmem:[%s330 + $0x250] sm:$0xff] %vm2205, %v2151
          %2281 = vst.msk [vmem:[%s330 + $0x258] sm:$0xff] %vm2205, %v2152
          %2282 = vst.msk [vmem:[%s330 + $0x260] sm:$0xff] %vm2205, %v2153
          %2283 = vst.msk [vmem:[%s330 + $0x268] sm:$0xff] %vm2205, %v2154
          %2284 = vst.msk [vmem:[%s330 + $0x270] sm:$0xff] %vm2205, %v2155
          %2285 = vst.msk [vmem:[%s330 + $0x278] sm:$0xff] %vm2205, %v2156
          %2286 = vst.msk [vmem:[%s330 + $0x280] sm:$0xff] %vm2205, %v2157
          %2287 = vst.msk [vmem:[%s330 + $0x288] sm:$0xff] %vm2205, %v2158
          %2288 = vst.msk [vmem:[%s330 + $0x290] sm:$0xff] %vm2205, %v2159
          %2289 = vst.msk [vmem:[%s330 + $0x298] sm:$0xff] %vm2205, %v2160
          %2290 = vst.msk [vmem:[%s330 + $0x2a0] sm:$0xff] %vm2205, %v2161
          %2291 = vst.msk [vmem:[%s330 + $0x2a8] sm:$0xff] %vm2205, %v2162
          %2292 = vst.msk [vmem:[%s330 + $0x2b0] sm:$0xff] %vm2205, %v2163
          %2293 = vst.msk [vmem:[%s330 + $0x2b8] sm:$0xff] %vm2205, %v2164
          %2294 = vst.msk [vmem:[%s330 + $0x2c0] sm:$0xff] %vm2205, %v2165
          %2295 = vst.msk [vmem:[%s330 + $0x2c8] sm:$0xff] %vm2205, %v2166
          %2296 = vst.msk [vmem:[%s330 + $0x2d0] sm:$0xff] %vm2205, %v2167
          %2297 = vst.msk [vmem:[%s330 + $0x2d8] sm:$0xff] %vm2205, %v2168
          %2298 = vst.msk [vmem:[%s330 + $0x2e0] sm:$0xff] %vm2205, %v2169
          %2299 = vst.msk [vmem:[%s330 + $0x2e8] sm:$0xff] %vm2205, %v2170
          %2300 = vst.msk [vmem:[%s330 + $0x2f0] sm:$0xff] %vm2205, %v2171
          %2301 = vst.msk [vmem:[%s330 + $0x2f8] sm:$0xff] %vm2205, %v2172
          %2302 = vst.msk [vmem:[%s330 + $0x300] sm:$0xff] %vm2205, %v2173
          %2303 = vst.msk [vmem:[%s330 + $0x308] sm:$0xff] %vm2205, %v2174
          %2304 = vst.msk [vmem:[%s330 + $0x310] sm:$0xff] %vm2205, %v2175
          %2305 = vst.msk [vmem:[%s330 + $0x318] sm:$0xff] %vm2205, %v2176
          %2306 = vst.msk [vmem:[%s330 + $0x320] sm:$0xff] %vm2205, %v2177
          %2307 = vst.msk [vmem:[%s330 + $0x328] sm:$0xff] %vm2205, %v2178
          %2308 = vst.msk [vmem:[%s330 + $0x330] sm:$0xff] %vm2205, %v2179
          %2309 = vst.msk [vmem:[%s330 + $0x338] sm:$0xff] %vm2205, %v2180
          %2310 = vst.msk [vmem:[%s330 + $0x340] sm:$0xff] %vm2205, %v2181
          %2311 = vst.msk [vmem:[%s330 + $0x348] sm:$0xff] %vm2205, %v2182
          %2312 = vst.msk [vmem:[%s330 + $0x350] sm:$0xff] %vm2205, %v2183
          %2313 = vst.msk [vmem:[%s330 + $0x358] sm:$0xff] %vm2205, %v2184
          %2314 = vst.msk [vmem:[%s330 + $0x360] sm:$0xff] %vm2205, %v2185
          %2315 = vst.msk [vmem:[%s330 + $0x368] sm:$0xff] %vm2205, %v2186
          %2316 = vst.msk [vmem:[%s330 + $0x370] sm:$0xff] %vm2205, %v2187
          %2317 = vst.msk [vmem:[%s330 + $0x378] sm:$0xff] %vm2205, %v2188
          %2318 = vst.msk [vmem:[%s330 + $0x380] sm:$0xff] %vm2205, %v2189
          %2319 = vst.msk [vmem:[%s330 + $0x388] sm:$0xff] %vm2205, %v2190
          %2320 = vst.msk [vmem:[%s330 + $0x390] sm:$0xff] %vm2205, %v2191
          %2321 = vst.msk [vmem:[%s330 + $0x398] sm:$0xff] %vm2205, %v2192
          %2322 = vst.msk [vmem:[%s330 + $0x3a0] sm:$0xff] %vm2205, %v2193
          %2323 = vst.msk [vmem:[%s330 + $0x3a8] sm:$0xff] %vm2205, %v2194
          %2324 = vst.msk [vmem:[%s330 + $0x3b0] sm:$0xff] %vm2205, %v2195
          %2325 = vst.msk [vmem:[%s330 + $0x3b8] sm:$0xff] %vm2205, %v2196
          %2326 = vst.msk [vmem:[%s330 + $0x3c0] sm:$0xff] %vm2205, %v2197
          %2327 = vst.msk [vmem:[%s330 + $0x3c8] sm:$0xff] %vm2205, %v2198
          %2328 = vst.msk [vmem:[%s330 + $0x3d0] sm:$0xff] %vm2205, %v2199
          %2329 = vst.msk [vmem:[%s330 + $0x3d8] sm:$0xff] %vm2205, %v2200
          %2330 = vst.msk [vmem:[%s330 + $0x3e0] sm:$0xff] %vm2205, %v2201
          %2331 = vst.msk [vmem:[%s330 + $0x3e8] sm:$0xff] %vm2205, %v2202
          %2332 = vst.msk [vmem:[%s330 + $0x3f0] sm:$0xff] %vm2205, %v2203
          %2333 = vst.msk [vmem:[%s330 + $0x3f8] sm:$0xff] %vm2205, %v2204
        $region60: #{tpu_custom_call.1} parent=43 // pred_fallthru
          _
        %p2334 = scmp.lt.s32.totalorder %s27, 0
        %s2335 = scalar_select %p2334, %s27, 0
        %p2336 = scmp.lt.s32.totalorder %s26, 3
        %s2337 = scalar_select %p2336, %s26, 3
        %s2338 = smul.addr %s2337, 128
        %s2339 = smul.addr %s2335, 512
        %s2340 = sadd.s32 %s2338, %s2339
        %s2341 = smul.addr %s2340, 8
        %s2342 = scalar_lea.vmem %s6, %s2341
        // Predicated region
        $region61: #{tpu_custom_call.1} parent=43 // pred_check
          %p2343 = pneg %p197
        $region62: #{tpu_custom_call.1} parent=43 // pred_check_branch
          %2345 = sbr.rel (%p2343) target = $region64
        $region63: #{tpu_custom_call.1} parent=43 // pred_region
          _
        $region64: #{tpu_custom_call.1} parent=43 // pred_fallthru
          _
      $region44: #{tpu_custom_call.1} parent=5 // pred_fallthru
        _
      %p2346 = scmp.le.s32.totalorder 2, %s16
      // Predicated region
      $region65: #{tpu_custom_call.1} parent=5 // pred_check
        %p2347 = pneg %p2346
      $region66: #{tpu_custom_call.1} parent=5 // pred_check_branch
        %2349 = sbr.rel (%p2347) target = $region68
      $region67: #{tpu_custom_call.1} parent=5 // pred_region
        %s2350 = ssub.s32 %s16, 2
        // Predicated region
        $region69: #{tpu_custom_call.1} parent=67 // pred_check
          %p2351 = pneg %p203
        $region70: #{tpu_custom_call.1} parent=67 // pred_check_branch
          %2353 = sbr.rel (%p2351) target = $region72
        $region71: #{tpu_custom_call.1} parent=67 // pred_region
          %p2354 = scmp.lt.s32.totalorder %s30, 0
          %s2355 = scalar_select %p2354, %s30, 0
          %p2356 = scmp.lt.s32.totalorder %s29, 3
          %s2357 = scalar_select %p2356, %s29, 3
          %s2358 = smul.addr %s2357, 128
          %s2359 = smul.addr %s2355, 512
          %s2360 = sadd.s32 %s2358, %s2359
          %s2361 = smul.addr %s2360, 8
          %s2362 = scalar_lea.vmem %s6, %s2361
        $region72: #{tpu_custom_call.1} parent=67 // pred_fallthru
          _
      $region68: #{tpu_custom_call.1} parent=5 // pred_fallthru
        _
    $region6: #{tpu_custom_call.1} parent=1 // loop_footer
      %s20 = sadd.s32 1, %s16
    $region7: #{tpu_custom_call.1} parent=1 // loop_footer_branch
      %15 = sbr.rel target = $region3
    $region8: #{tpu_custom_call.1} parent=1 // loop_exit
      _
    %2363 = vsyncpa [#allocation3], 1
    %s2364 = scalar_lea.sflag [#allocation3], 1
    %2365 = vsyncpa %s2364, 1
    %2366 = vsyncpa [#allocation5], 1

</llo_original>
